<compile_context>
chip_gen: v7x
topology: tpu7x:2x2x1
jax: 0.10.0
libtpu: 0.0.40
codegen_flags: <defaults>
</compile_context>

<pallas_src>
import functools

import jax
import jax.numpy as jnp
from jax import lax
from jax.experimental import pallas as pl
from jax.experimental.pallas import tpu as pltpu


def _vmem_capacity_bytes():
    """Per-core VMEM capacity; conservative 64 MiB fallback (v7x-safe)."""
    try:
        return int(pltpu.get_tpu_info().vmem_capacity_bytes)
    except Exception:
        return 64 * 1024 * 1024


def _vmem_estimate(ts, bp, e, h, tv):
    """Rough per-chunk VMEM working set (double-buffered pipelined blocks)."""
    bf2, f4 = 2, 4
    est = 0
    est += 2 * ts * bp * e * bf2          # x chunk (bf16), double-buffered
    est += 2 * ts * bp * tv * f4          # logits block (f32), double-buffered
    est += 2 * h * tv * bf2               # W_fc tile (bf16)
    est += 2 * tv * f4                    # b_fc tile
    est += 2 * e * 4 * h * bf2            # W_ih packed (bf16)
    est += 2 * h * 4 * h * bf2            # W_hh packed (bf16)
    est += 2 * 4 * h * f4                 # gate bias
    est += ts * bp * 4 * h * f4           # fused gx scratch (f32)
    est += ts * bp * h * f4               # hs scratch (f32)
    est += 2 * bp * h * f4                # h, c state
    return est


def _decoder_lstm_fc_kernel(x_ref, wih_ref, whh_ref, b_ref, wfc_ref, bfc_ref,
                            out_ref,
                            h_ref, c_ref, gx_ref, hs_ref,
                            *, ts, bp, hdim):
    """Grid point (c, j): time-chunk c of `ts` steps, vocab tile j.

    x_ref   : (ts*bp, E)   bf16 time-major inputs of chunk c (row = t*bp + b)
    wih_ref : (E, 4H)      bf16 packed input->hidden weights (gate order i,f,g,o)
    whh_ref : (H, 4H)      bf16 packed hidden->hidden weights
    b_ref   : (1, 4H)      f32 packed bias (b_ih + b_hh)
    wfc_ref : (H, TV)      bf16 output-projection tile j (already transposed)
    bfc_ref : (1, TV)      f32 output-projection bias tile j
    out_ref : (ts*bp, TV)  f32 logits tile (time-major rows)
    h_ref   : (bp, H)      f32 hidden state (persists across grid steps)
    c_ref   : (bp, H)      f32 cell state
    gx_ref  : (ts*bp, 4H)  f32 fused hoisted input projections of the chunk
    hs_ref  : (ts*bp, H)   f32 hidden states of the chunk (FC input)
    """
    c_idx = pl.program_id(0)     # time-chunk index (recurrent axis)
    j_idx = pl.program_id(1)     # vocab-tile index
    H = hdim

    @pl.when(jnp.logical_and(c_idx == 0, j_idx == 0))
    def _():
        h_ref[...] = jnp.zeros_like(h_ref)
        c_ref[...] = jnp.zeros_like(c_ref)

    # The recurrence runs once per chunk (first vocab tile only).
    @pl.when(j_idx == 0)
    def _():
        x = x_ref[...]                                           # (ts*bp, E) bf16

        # (a) Fused hoisted input projection: ONE (ts*bp,E)x(E,4H) bf16 matmul,
        #     f32 accumulation, bias folded in; one wide lane-dense store.
        gx_ref[...] = (jnp.dot(x, wih_ref[...],
                               preferred_element_type=jnp.float32)
                       + b_ref[...])

        # Hoist the recurrent weights out of the time loop.
        w_hh = whh_ref[...]                                      # (H, 4H) bf16

        # (b) Sequential recurrence: ONE fused (bp,H)x(H,4H) matmul per step.
        def step(t, carry):
            h, c = carry
            row = pl.multiple_of(t * bp, bp)
            gates = gx_ref[pl.ds(row, bp), :] + jnp.dot(
                h.astype(jnp.bfloat16), w_hh,
                preferred_element_type=jnp.float32)              # (bp, 4H) f32
            sig = jax.nn.sigmoid(gates)                          # full-width EUP op
            i_t = sig[:, 0 * H:1 * H]
            f_t = sig[:, 1 * H:2 * H]
            o_t = sig[:, 3 * H:4 * H]
            g_t = jnp.tanh(gates[:, 2 * H:3 * H])                # g lane-group only
            c_new = f_t * c + i_t * g_t                          # f32 elementwise
            h_new = o_t * jnp.tanh(c_new)
            hs_ref[pl.ds(row, bp), :] = h_new
            return h_new, c_new

        h_fin, c_fin = lax.fori_loop(0, ts, step, (h_ref[...], c_ref[...]),
                                     unroll=(True if ts <= 32 else 8))
        h_ref[...] = h_fin
        c_ref[...] = c_fin

    # (c) Hoisted, V-tiled vocab projection: one large bf16 matmul per (c, j),
    #     f32 accumulation, lane-dense (TV = k*128) store.
    hs16 = hs_ref[...].astype(jnp.bfloat16)
    out_ref[...] = (jnp.dot(hs16, wfc_ref[...],
                            preferred_element_type=jnp.float32)
                    + bfc_ref[...]).astype(out_ref.dtype)


def lstm_fc_pallas(vals_bte, w_ih, w_hh, b_ih, b_hh, w_fc, b_fc, *,
                   time_chunk=32, vocab_tile=512):
    """vals_bte: (B, T, E) f32 batch-first. Returns logits (B, T, V) f32."""
    B, T, E = vals_bte.shape
    H = w_hh.shape[1]
    V = w_fc.shape[0]

    # Batch padded to the f32 sublane granularity.
    Bp = ((B + 7) // 8) * 8

    # Vocab tiling: lane-dense tiles (multiple of 128), vocab padded to a tile.
    Vp0 = ((V + 127) // 128) * 128
    TVr = ((max(vocab_tile, 128) + 127) // 128) * 128
    TV = min(Vp0, TVr)
    Vp = ((V + TV - 1) // TV) * TV
    n_vt = Vp // TV

    # Generation-aware time chunk: shrink until the working set fits the
    # scoped-VMEM budget (64 MiB physical on v7x vs 128 MiB on v5e/v6e).
    capacity = _vmem_capacity_bytes()
    budget = capacity // 2
    TS = max(1, min(time_chunk, T))
    while TS > 8 and _vmem_estimate(TS, Bp, E, H, TV) > budget:
        TS = max(8, TS // 2)
    Tp = ((T + TS - 1) // TS) * TS
    n_chunks = Tp // TS

    vmem_limit = int(min(int(capacity * 0.9),
                         max(2 * _vmem_estimate(TS, Bp, E, H, TV),
                             32 * 1024 * 1024)))

    # Inputs: time-major rows (row = t*Bp + b), bf16 for the MXU.
    x = jnp.transpose(vals_bte, (1, 0, 2)).astype(jnp.float32)   # (T, B, E)
    x = jnp.pad(x, ((0, Tp - T), (0, Bp - B), (0, 0)))
    x = x.reshape(Tp * Bp, E).astype(jnp.bfloat16)

    # Packed weights (PyTorch gate order i, f, g, o along the 4H axis).
    wih_p = jnp.transpose(w_ih).astype(jnp.bfloat16)             # (E, 4H)
    whh_p = jnp.transpose(w_hh).astype(jnp.bfloat16)             # (H, 4H)
    b_p = (b_ih + b_hh).astype(jnp.float32).reshape(1, 4 * H)    # (1, 4H) f32
    wfc_t = jnp.pad(jnp.transpose(w_fc).astype(jnp.float32),
                    ((0, 0), (0, Vp - V))).astype(jnp.bfloat16)  # (H, Vp)
    bfc = jnp.pad(b_fc.astype(jnp.float32), (0, Vp - V)).reshape(1, Vp)

    kernel = functools.partial(_decoder_lstm_fc_kernel, ts=TS, bp=Bp, hdim=H)

    logits_flat = pl.pallas_call(
        kernel,
        out_shape=jax.ShapeDtypeStruct((Tp * Bp, Vp), jnp.float32),
        grid_spec=pltpu.PrefetchScalarGridSpec(
            num_scalar_prefetch=0,
            grid=(n_chunks, n_vt),
            in_specs=[
                pl.BlockSpec((TS * Bp, E), lambda c, j: (c, 0)),   # x chunk
                pl.BlockSpec((E, 4 * H), lambda c, j: (0, 0)),     # W_ih packed
                pl.BlockSpec((H, 4 * H), lambda c, j: (0, 0)),     # W_hh packed
                pl.BlockSpec((1, 4 * H), lambda c, j: (0, 0)),     # gate bias
                pl.BlockSpec((H, TV), lambda c, j: (0, j)),        # W_fc^T tile
                pl.BlockSpec((1, TV), lambda c, j: (0, j)),        # b_fc tile
            ],
            out_specs=pl.BlockSpec((TS * Bp, TV), lambda c, j: (c, j)),
            scratch_shapes=[
                pltpu.VMEM((Bp, H), jnp.float32),                  # h state
                pltpu.VMEM((Bp, H), jnp.float32),                  # c state
                pltpu.VMEM((TS * Bp, 4 * H), jnp.float32),         # fused gx
                pltpu.VMEM((TS * Bp, H), jnp.float32),             # chunk hiddens
            ],
        ),
        compiler_params=pltpu.CompilerParams(
            dimension_semantics=("arbitrary", "arbitrary"),
            vmem_limit_bytes=vmem_limit,
        ),
    )(x, wih_p, whh_p, b_p, wfc_t, bfc)

    logits = logits_flat.reshape(Tp, Bp, Vp)[:T, :B, :V]           # (T, B, V)
    return jnp.transpose(logits, (1, 0, 2))                        # (B, T, V)


class DecoderRNNPallas:
    """JAX/Pallas port of the PyTorch DecoderRNN (forward only)."""

    def __init__(self, embed_size, hidden_size, vocab_size, num_layers=1, key=None):
        assert num_layers == 1, "Pallas port implements num_layers=1 (as in defaults)"
        self.embed_size = embed_size
        self.hidden_size = hidden_size
        self.vocab_size = vocab_size

        if key is None:
            key = jax.random.PRNGKey(42)
        ks = jax.random.split(key, 7)

        # Deterministic synthetic initialization (PyTorch-default-like ranges).
        self.embed_w = jax.random.normal(ks[0], (vocab_size, embed_size), jnp.float32)

        k_lstm = 1.0 / jnp.sqrt(hidden_size)
        self.w_ih = jax.random.uniform(ks[1], (4 * hidden_size, embed_size),
                                       jnp.float32, -k_lstm, k_lstm)
        self.w_hh = jax.random.uniform(ks[2], (4 * hidden_size, hidden_size),
                                       jnp.float32, -k_lstm, k_lstm)
        self.b_ih = jax.random.uniform(ks[3], (4 * hidden_size,),
                                       jnp.float32, -k_lstm, k_lstm)
        self.b_hh = jax.random.uniform(ks[4], (4 * hidden_size,),
                                       jnp.float32, -k_lstm, k_lstm)

        k_fc = 1.0 / jnp.sqrt(hidden_size)
        self.fc_w = jax.random.uniform(ks[5], (vocab_size, hidden_size),
                                       jnp.float32, -k_fc, k_fc)
        self.fc_b = jax.random.uniform(ks[6], (vocab_size,),
                                       jnp.float32, -k_fc, k_fc)

    def __call__(self, features, captions):
        """features: (B, E) f32; captions: (B, Tc) int32. Returns (B, Tc, V)."""
        captions = captions[:, :-1]                                  # (B, Tc-1)
        captions_embed = jnp.take(self.embed_w, captions, axis=0)    # (B, Tc-1, E)
        vals = jnp.concatenate(
            [features[:, None, :].astype(jnp.float32), captions_embed], axis=1)
        return lstm_fc_pallas(vals, self.w_ih, self.w_hh,
                              self.b_ih, self.b_hh, self.fc_w, self.fc_b)


def _reference_forward(model, features, captions):
    """Pure-JAX f32 reference (lax.scan LSTM) for the correctness check."""
    captions = captions[:, :-1]
    emb = jnp.take(model.embed_w, captions, axis=0)
    vals = jnp.concatenate([features[:, None, :], emb], axis=1)      # (B, T, E)
    B = vals.shape[0]
    H = model.hidden_size

    def step(carry, x_t):
        h, c = carry
        gates = (x_t @ model.w_ih.T + model.b_ih
                 + h @ model.w_hh.T + model.b_hh)
        i = jax.nn.sigmoid(gates[:, 0 * H:1 * H])
        f = jax.nn.sigmoid(gates[:, 1 * H:2 * H])
        g = jnp.tanh(gates[:, 2 * H:3 * H])
        o = jax.nn.sigmoid(gates[:, 3 * H:4 * H])
        c = f * c + i * g
        h = o * jnp.tanh(c)
        return (h, c), h

    h0 = jnp.zeros((B, H), jnp.float32)
    c0 = jnp.zeros((B, H), jnp.float32)
    _, hs = jax.lax.scan(step, (h0, c0), jnp.transpose(vals, (1, 0, 2)))
    outs = jnp.transpose(hs, (1, 0, 2))                              # (B, T, H)
    return outs @ model.fc_w.T + model.fc_b


if __name__ == "__main__":
    EMBED, HIDDEN, VOCAB = 32, 32, 128
    BATCH, CAP_LEN = 2, 8   # forward seq length = 1 + (CAP_LEN - 1) = 8

    key = jax.random.PRNGKey(0)
    k_feat, k_cap, k_model = jax.random.split(key, 3)

    features = jax.random.normal(k_feat, (BATCH, EMBED), jnp.float32)
    captions = jax.random.randint(k_cap, (BATCH, CAP_LEN), 0, VOCAB, jnp.int32)

    model = DecoderRNNPallas(EMBED, HIDDEN, VOCAB, num_layers=1, key=k_model)

    out = jax.block_until_ready(model(features, captions))
    ref = jax.block_until_ready(_reference_forward(model, features, captions))

    assert out.shape == (BATCH, CAP_LEN, VOCAB), out.shape
    # Tolerance relaxed vs the pure-f32 reference because matmul inputs are
    # bf16 (f32 accumulation, f32 h/c state), per the performance review.
    assert jnp.allclose(out, ref, atol=5e-2, rtol=5e-2), \
        f"max abs diff {jnp.max(jnp.abs(out - ref))}"

    print("KERNEL_OK")
</pallas_src>

<mosaic_0001>
module attributes {stable_mosaic.version = 11 : i64} {
  func.func @_decoder_lstm_fc_kernel(%arg0: i32, %arg1: i32, %arg2: memref<64x32xbf16, #tpu.memory_space<vmem>>, %arg3: memref<32x128xbf16, #tpu.memory_space<vmem>>, %arg4: memref<32x128xbf16, #tpu.memory_space<vmem>>, %arg5: memref<1x128xf32, #tpu.memory_space<vmem>>, %arg6: memref<32x128xbf16, #tpu.memory_space<vmem>>, %arg7: memref<1x128xf32, #tpu.memory_space<vmem>>, %arg8: memref<64x128xf32, #tpu.memory_space<vmem>>, %arg9: memref<8x32xf32, #tpu.memory_space<vmem>>, %arg10: memref<8x32xf32, #tpu.memory_space<vmem>>, %arg11: memref<64x128xf32, #tpu.memory_space<vmem>>, %arg12: memref<64x32xf32, #tpu.memory_space<vmem>>) attributes {dimension_semantics = [#tpu.dimension_semantics<arbitrary>, #tpu.dimension_semantics<arbitrary>], iteration_bounds = array<i64: 1, 1>, scalar_prefetch = 0 : i64, scratch_operands = 4 : i64, tpu.core_type = #tpu.core_type<tc>, window_params = [{transform_indices = @transform_0, window_bounds = array<i64: 64, 32>}, {pipeline_mode = #tpu.pipeline_mode<synchronous>, transform_indices = @transform_1, window_bounds = array<i64: 32, 128>}, {pipeline_mode = #tpu.pipeline_mode<synchronous>, transform_indices = @transform_2, window_bounds = array<i64: 32, 128>}, {pipeline_mode = #tpu.pipeline_mode<synchronous>, transform_indices = @transform_3, window_bounds = array<i64: 1, 128>}, {transform_indices = @transform_4, window_bounds = array<i64: 32, 128>}, {transform_indices = @transform_5, window_bounds = array<i64: 1, 128>}, {transform_indices = @transform_6, window_bounds = array<i64: 64, 128>}]} {
    %c0_i32 = arith.constant 0 : i32
    %0 = arith.cmpi eq, %arg0, %c0_i32 : i32
    %c0_i32_0 = arith.constant 0 : i32
    %1 = arith.cmpi eq, %arg1, %c0_i32_0 : i32
    %2 = arith.andi %0, %1 : i1
    %3 = arith.extui %2 : i1 to i32
    %c0_i32_1 = arith.constant 0 : i32
    %4 = arith.cmpi ne, %3, %c0_i32_1 : i32
    scf.if %4 {
      %cst_11 = arith.constant 0.000000e+00 : f32
      %16 = vector.broadcast %cst_11 : f32 to vector<8x32xf32>
      %c0_12 = arith.constant 0 : index
      %c0_13 = arith.constant 0 : index
      %17 = vector.load %arg9[%c0_12, %c0_13] : memref<8x32xf32, #tpu.memory_space<vmem>>, vector<8x32xf32>
      tpu.vector_store %arg9[%c0_12, %c0_13], %16 {strides = array<i32>} : memref<8x32xf32, #tpu.memory_space<vmem>>, vector<8x32xf32>,
      %cst_14 = arith.constant 0.000000e+00 : f32
      %18 = vector.broadcast %cst_14 : f32 to vector<8x32xf32>
      %c0_15 = arith.constant 0 : index
      %c0_16 = arith.constant 0 : index
      %19 = vector.load %arg10[%c0_15, %c0_16] : memref<8x32xf32, #tpu.memory_space<vmem>>, vector<8x32xf32>
      tpu.vector_store %arg10[%c0_15, %c0_16], %18 {strides = array<i32>} : memref<8x32xf32, #tpu.memory_space<vmem>>, vector<8x32xf32>,
    } else {
    }
    %c0_i32_2 = arith.constant 0 : i32
    %5 = arith.cmpi eq, %arg1, %c0_i32_2 : i32
    %6 = arith.extui %5 : i1 to i32
    %c0_i32_3 = arith.constant 0 : i32
    %7 = arith.cmpi ne, %6, %c0_i32_3 : i32
    scf.if %7 {
      %c0_11 = arith.constant 0 : index
      %c0_12 = arith.constant 0 : index
      %16 = vector.load %arg2[%c0_11, %c0_12] : memref<64x32xbf16, #tpu.memory_space<vmem>>, vector<64x32xbf16>
      %c0_13 = arith.constant 0 : index
      %c0_14 = arith.constant 0 : index
      %17 = vector.load %arg3[%c0_13, %c0_14] : memref<32x128xbf16, #tpu.memory_space<vmem>>, vector<32x128xbf16>
      %cst_15 = arith.constant dense<0.000000e+00> : vector<64x128xf32>
      %18 = tpu.matmul %16, %17, %cst_15 {dimension_numbers = #tpu.dot_dimension_numbers<[1], [0], [0], [1], [0, 0, 1, 1], [], []>} : vector<64x32xbf16>, vector<32x128xbf16>, vector<64x128xf32> -> vector<64x128xf32>
      %c0_16 = arith.constant 0 : index
      %c0_17 = arith.constant 0 : index
      %19 = vector.load %arg5[%c0_16, %c0_17] : memref<1x128xf32, #tpu.memory_space<vmem>>, vector<1x128xf32>
      %20 = vector.broadcast %19 : vector<1x128xf32> to vector<64x128xf32>
      %21 = arith.addf %18, %20 : vector<64x128xf32>
      %c0_18 = arith.constant 0 : index
      %c0_19 = arith.constant 0 : index
      %22 = vector.load %arg11[%c0_18, %c0_19] : memref<64x128xf32, #tpu.memory_space<vmem>>, vector<64x128xf32>
      tpu.vector_store %arg11[%c0_18, %c0_19], %21 {strides = array<i32>} : memref<64x128xf32, #tpu.memory_space<vmem>>, vector<64x128xf32>,
      %c0_20 = arith.constant 0 : index
      %c0_21 = arith.constant 0 : index
      %23 = vector.load %arg4[%c0_20, %c0_21] : memref<32x128xbf16, #tpu.memory_space<vmem>>, vector<32x128xbf16>
      %c0_22 = arith.constant 0 : index
      %c0_23 = arith.constant 0 : index
      %24 = vector.load %arg9[%c0_22, %c0_23] : memref<8x32xf32, #tpu.memory_space<vmem>>, vector<8x32xf32>
      %c0_24 = arith.constant 0 : index
      %c0_25 = arith.constant 0 : index
      %25 = vector.load %arg10[%c0_24, %c0_25] : memref<8x32xf32, #tpu.memory_space<vmem>>, vector<8x32xf32>
      %c0_i32_26 = arith.constant 0 : i32
      %c8_i32 = arith.constant 8 : i32
      %26 = arith.muli %c0_i32_26, %c8_i32 : i32
      %27 = tpu.assume_multiple %26, 8 : i32
      %28 = arith.index_cast %27 : i32 to index
      %c0_27 = arith.constant 0 : index
      %29 = vector.load %arg11[%28, %c0_27] : memref<64x128xf32, #tpu.memory_space<vmem>>, vector<8x128xf32>
      %30 = arith.truncf %24 : vector<8x32xf32> to vector<8x32xbf16>
      %cst_28 = arith.constant dense<0.000000e+00> : vector<8x128xf32>
      %31 = tpu.matmul %30, %23, %cst_28 {dimension_numbers = #tpu.dot_dimension_numbers<[1], [0], [0], [1], [0, 0, 1, 1], [], []>} : vector<8x32xbf16>, vector<32x128xbf16>, vector<8x128xf32> -> vector<8x128xf32>
      %32 = arith.addf %29, %31 : vector<8x128xf32>
      %33 = arith.negf %32 : vector<8x128xf32>
      %34 = math.exp %33 : vector<8x128xf32>
      %cst_29 = arith.constant 1.000000e+00 : f32
      %35 = vector.broadcast %cst_29 : f32 to vector<8x128xf32>
      %36 = arith.addf %35, %34 : vector<8x128xf32>
      %37 = arith.divf %35, %36 : vector<8x128xf32>
      %38 = vector.extract_strided_slice %37 {offsets = [0, 0], sizes = [8, 32], strides = [1, 1]} : vector<8x128xf32> to vector<8x32xf32>
      %39 = vector.extract_strided_slice %37 {offsets = [0, 32], sizes = [8, 32], strides = [1, 1]} : vector<8x128xf32> to vector<8x32xf32>
      %40 = vector.extract_strided_slice %37 {offsets = [0, 96], sizes = [8, 32], strides = [1, 1]} : vector<8x128xf32> to vector<8x32xf32>
      %41 = vector.extract_strided_slice %32 {offsets = [0, 64], sizes = [8, 32], strides = [1, 1]} : vector<8x128xf32> to vector<8x32xf32>
      %42 = math.tanh %41 : vector<8x32xf32>
      %43 = arith.mulf %39, %25 : vector<8x32xf32>
      %44 = arith.mulf %38, %42 : vector<8x32xf32>
      %45 = arith.addf %43, %44 : vector<8x32xf32>
      %46 = math.tanh %45 : vector<8x32xf32>
      %47 = arith.mulf %40, %46 : vector<8x32xf32>
      %48 = arith.index_cast %27 : i32 to index
      %c0_30 = arith.constant 0 : index
      %49 = vector.load %arg12[%48, %c0_30] : memref<64x32xf32, #tpu.memory_space<vmem>>, vector<8x32xf32>
      tpu.vector_store %arg12[%48, %c0_30], %47 {strides = array<i32>} : memref<64x32xf32, #tpu.memory_space<vmem>>, vector<8x32xf32>,
      %c1_i32 = arith.constant 1 : i32
      %c8_i32_31 = arith.constant 8 : i32
      %50 = arith.muli %c1_i32, %c8_i32_31 : i32
      %51 = tpu.assume_multiple %50, 8 : i32
      %52 = arith.index_cast %51 : i32 to index
      %c0_32 = arith.constant 0 : index
      %53 = vector.load %arg11[%52, %c0_32] : memref<64x128xf32, #tpu.memory_space<vmem>>, vector<8x128xf32>
      %54 = arith.truncf %47 : vector<8x32xf32> to vector<8x32xbf16>
      %cst_33 = arith.constant dense<0.000000e+00> : vector<8x128xf32>
      %55 = tpu.matmul %54, %23, %cst_33 {dimension_numbers = #tpu.dot_dimension_numbers<[1], [0], [0], [1], [0, 0, 1, 1], [], []>} : vector<8x32xbf16>, vector<32x128xbf16>, vector<8x128xf32> -> vector<8x128xf32>
      %56 = arith.addf %53, %55 : vector<8x128xf32>
      %57 = arith.negf %56 : vector<8x128xf32>
      %58 = math.exp %57 : vector<8x128xf32>
      %cst_34 = arith.constant 1.000000e+00 : f32
      %59 = vector.broadcast %cst_34 : f32 to vector<8x128xf32>
      %60 = arith.addf %59, %58 : vector<8x128xf32>
      %61 = arith.divf %59, %60 : vector<8x128xf32>
      %62 = vector.extract_strided_slice %61 {offsets = [0, 0], sizes = [8, 32], strides = [1, 1]} : vector<8x128xf32> to vector<8x32xf32>
      %63 = vector.extract_strided_slice %61 {offsets = [0, 32], sizes = [8, 32], strides = [1, 1]} : vector<8x128xf32> to vector<8x32xf32>
      %64 = vector.extract_strided_slice %61 {offsets = [0, 96], sizes = [8, 32], strides = [1, 1]} : vector<8x128xf32> to vector<8x32xf32>
      %65 = vector.extract_strided_slice %56 {offsets = [0, 64], sizes = [8, 32], strides = [1, 1]} : vector<8x128xf32> to vector<8x32xf32>
      %66 = math.tanh %65 : vector<8x32xf32>
      %67 = arith.mulf %63, %45 : vector<8x32xf32>
      %68 = arith.mulf %62, %66 : vector<8x32xf32>
      %69 = arith.addf %67, %68 : vector<8x32xf32>
      %70 = math.tanh %69 : vector<8x32xf32>
      %71 = arith.mulf %64, %70 : vector<8x32xf32>
      %72 = arith.index_cast %51 : i32 to index
      %c0_35 = arith.constant 0 : index
      %73 = vector.load %arg12[%72, %c0_35] : memref<64x32xf32, #tpu.memory_space<vmem>>, vector<8x32xf32>
      tpu.vector_store %arg12[%72, %c0_35], %71 {strides = array<i32>} : memref<64x32xf32, #tpu.memory_space<vmem>>, vector<8x32xf32>,
      %c2_i32 = arith.constant 2 : i32
      %c8_i32_36 = arith.constant 8 : i32
      %74 = arith.muli %c2_i32, %c8_i32_36 : i32
      %75 = tpu.assume_multiple %74, 8 : i32
      %76 = arith.index_cast %75 : i32 to index
      %c0_37 = arith.constant 0 : index
      %77 = vector.load %arg11[%76, %c0_37] : memref<64x128xf32, #tpu.memory_space<vmem>>, vector<8x128xf32>
      %78 = arith.truncf %71 : vector<8x32xf32> to vector<8x32xbf16>
      %cst_38 = arith.constant dense<0.000000e+00> : vector<8x128xf32>
      %79 = tpu.matmul %78, %23, %cst_38 {dimension_numbers = #tpu.dot_dimension_numbers<[1], [0], [0], [1], [0, 0, 1, 1], [], []>} : vector<8x32xbf16>, vector<32x128xbf16>, vector<8x128xf32> -> vector<8x128xf32>
      %80 = arith.addf %77, %79 : vector<8x128xf32>
      %81 = arith.negf %80 : vector<8x128xf32>
      %82 = math.exp %81 : vector<8x128xf32>
      %cst_39 = arith.constant 1.000000e+00 : f32
      %83 = vector.broadcast %cst_39 : f32 to vector<8x128xf32>
      %84 = arith.addf %83, %82 : vector<8x128xf32>
      %85 = arith.divf %83, %84 : vector<8x128xf32>
      %86 = vector.extract_strided_slice %85 {offsets = [0, 0], sizes = [8, 32], strides = [1, 1]} : vector<8x128xf32> to vector<8x32xf32>
      %87 = vector.extract_strided_slice %85 {offsets = [0, 32], sizes = [8, 32], strides = [1, 1]} : vector<8x128xf32> to vector<8x32xf32>
      %88 = vector.extract_strided_slice %85 {offsets = [0, 96], sizes = [8, 32], strides = [1, 1]} : vector<8x128xf32> to vector<8x32xf32>
      %89 = vector.extract_strided_slice %80 {offsets = [0, 64], sizes = [8, 32], strides = [1, 1]} : vector<8x128xf32> to vector<8x32xf32>
      %90 = math.tanh %89 : vector<8x32xf32>
      %91 = arith.mulf %87, %69 : vector<8x32xf32>
      %92 = arith.mulf %86, %90 : vector<8x32xf32>
      %93 = arith.addf %91, %92 : vector<8x32xf32>
      %94 = math.tanh %93 : vector<8x32xf32>
      %95 = arith.mulf %88, %94 : vector<8x32xf32>
      %96 = arith.index_cast %75 : i32 to index
      %c0_40 = arith.constant 0 : index
      %97 = vector.load %arg12[%96, %c0_40] : memref<64x32xf32, #tpu.memory_space<vmem>>, vector<8x32xf32>
      tpu.vector_store %arg12[%96, %c0_40], %95 {strides = array<i32>} : memref<64x32xf32, #tpu.memory_space<vmem>>, vector<8x32xf32>,
      %c3_i32 = arith.constant 3 : i32
      %c8_i32_41 = arith.constant 8 : i32
      %98 = arith.muli %c3_i32, %c8_i32_41 : i32
      %99 = tpu.assume_multiple %98, 8 : i32
      %100 = arith.index_cast %99 : i32 to index
      %c0_42 = arith.constant 0 : index
      %101 = vector.load %arg11[%100, %c0_42] : memref<64x128xf32, #tpu.memory_space<vmem>>, vector<8x128xf32>
      %102 = arith.truncf %95 : vector<8x32xf32> to vector<8x32xbf16>
      %cst_43 = arith.constant dense<0.000000e+00> : vector<8x128xf32>
      %103 = tpu.matmul %102, %23, %cst_43 {dimension_numbers = #tpu.dot_dimension_numbers<[1], [0], [0], [1], [0, 0, 1, 1], [], []>} : vector<8x32xbf16>, vector<32x128xbf16>, vector<8x128xf32> -> vector<8x128xf32>
      %104 = arith.addf %101, %103 : vector<8x128xf32>
      %105 = arith.negf %104 : vector<8x128xf32>
      %106 = math.exp %105 : vector<8x128xf32>
      %cst_44 = arith.constant 1.000000e+00 : f32
      %107 = vector.broadcast %cst_44 : f32 to vector<8x128xf32>
      %108 = arith.addf %107, %106 : vector<8x128xf32>
      %109 = arith.divf %107, %108 : vector<8x128xf32>
      %110 = vector.extract_strided_slice %109 {offsets = [0, 0], sizes = [8, 32], strides = [1, 1]} : vector<8x128xf32> to vector<8x32xf32>
      %111 = vector.extract_strided_slice %109 {offsets = [0, 32], sizes = [8, 32], strides = [1, 1]} : vector<8x128xf32> to vector<8x32xf32>
      %112 = vector.extract_strided_slice %109 {offsets = [0, 96], sizes = [8, 32], strides = [1, 1]} : vector<8x128xf32> to vector<8x32xf32>
      %113 = vector.extract_strided_slice %104 {offsets = [0, 64], sizes = [8, 32], strides = [1, 1]} : vector<8x128xf32> to vector<8x32xf32>
      %114 = math.tanh %113 : vector<8x32xf32>
      %115 = arith.mulf %111, %93 : vector<8x32xf32>
      %116 = arith.mulf %110, %114 : vector<8x32xf32>
      %117 = arith.addf %115, %116 : vector<8x32xf32>
      %118 = math.tanh %117 : vector<8x32xf32>
      %119 = arith.mulf %112, %118 : vector<8x32xf32>
      %120 = arith.index_cast %99 : i32 to index
      %c0_45 = arith.constant 0 : index
      %121 = vector.load %arg12[%120, %c0_45] : memref<64x32xf32, #tpu.memory_space<vmem>>, vector<8x32xf32>
      tpu.vector_store %arg12[%120, %c0_45], %119 {strides = array<i32>} : memref<64x32xf32, #tpu.memory_space<vmem>>, vector<8x32xf32>,
      %c4_i32 = arith.constant 4 : i32
      %c8_i32_46 = arith.constant 8 : i32
      %122 = arith.muli %c4_i32, %c8_i32_46 : i32
      %123 = tpu.assume_multiple %122, 8 : i32
      %124 = arith.index_cast %123 : i32 to index
      %c0_47 = arith.constant 0 : index
      %125 = vector.load %arg11[%124, %c0_47] : memref<64x128xf32, #tpu.memory_space<vmem>>, vector<8x128xf32>
      %126 = arith.truncf %119 : vector<8x32xf32> to vector<8x32xbf16>
      %cst_48 = arith.constant dense<0.000000e+00> : vector<8x128xf32>
      %127 = tpu.matmul %126, %23, %cst_48 {dimension_numbers = #tpu.dot_dimension_numbers<[1], [0], [0], [1], [0, 0, 1, 1], [], []>} : vector<8x32xbf16>, vector<32x128xbf16>, vector<8x128xf32> -> vector<8x128xf32>
      %128 = arith.addf %125, %127 : vector<8x128xf32>
      %129 = arith.negf %128 : vector<8x128xf32>
      %130 = math.exp %129 : vector<8x128xf32>
      %cst_49 = arith.constant 1.000000e+00 : f32
      %131 = vector.broadcast %cst_49 : f32 to vector<8x128xf32>
      %132 = arith.addf %131, %130 : vector<8x128xf32>
      %133 = arith.divf %131, %132 : vector<8x128xf32>
      %134 = vector.extract_strided_slice %133 {offsets = [0, 0], sizes = [8, 32], strides = [1, 1]} : vector<8x128xf32> to vector<8x32xf32>
      %135 = vector.extract_strided_slice %133 {offsets = [0, 32], sizes = [8, 32], strides = [1, 1]} : vector<8x128xf32> to vector<8x32xf32>
      %136 = vector.extract_strided_slice %133 {offsets = [0, 96], sizes = [8, 32], strides = [1, 1]} : vector<8x128xf32> to vector<8x32xf32>
      %137 = vector.extract_strided_slice %128 {offsets = [0, 64], sizes = [8, 32], strides = [1, 1]} : vector<8x128xf32> to vector<8x32xf32>
      %138 = math.tanh %137 : vector<8x32xf32>
      %139 = arith.mulf %135, %117 : vector<8x32xf32>
      %140 = arith.mulf %134, %138 : vector<8x32xf32>
      %141 = arith.addf %139, %140 : vector<8x32xf32>
      %142 = math.tanh %141 : vector<8x32xf32>
      %143 = arith.mulf %136, %142 : vector<8x32xf32>
      %144 = arith.index_cast %123 : i32 to index
      %c0_50 = arith.constant 0 : index
      %145 = vector.load %arg12[%144, %c0_50] : memref<64x32xf32, #tpu.memory_space<vmem>>, vector<8x32xf32>
      tpu.vector_store %arg12[%144, %c0_50], %143 {strides = array<i32>} : memref<64x32xf32, #tpu.memory_space<vmem>>, vector<8x32xf32>,
      %c5_i32 = arith.constant 5 : i32
      %c8_i32_51 = arith.constant 8 : i32
      %146 = arith.muli %c5_i32, %c8_i32_51 : i32
      %147 = tpu.assume_multiple %146, 8 : i32
      %148 = arith.index_cast %147 : i32 to index
      %c0_52 = arith.constant 0 : index
      %149 = vector.load %arg11[%148, %c0_52] : memref<64x128xf32, #tpu.memory_space<vmem>>, vector<8x128xf32>
      %150 = arith.truncf %143 : vector<8x32xf32> to vector<8x32xbf16>
      %cst_53 = arith.constant dense<0.000000e+00> : vector<8x128xf32>
      %151 = tpu.matmul %150, %23, %cst_53 {dimension_numbers = #tpu.dot_dimension_numbers<[1], [0], [0], [1], [0, 0, 1, 1], [], []>} : vector<8x32xbf16>, vector<32x128xbf16>, vector<8x128xf32> -> vector<8x128xf32>
      %152 = arith.addf %149, %151 : vector<8x128xf32>
      %153 = arith.negf %152 : vector<8x128xf32>
      %154 = math.exp %153 : vector<8x128xf32>
      %cst_54 = arith.constant 1.000000e+00 : f32
      %155 = vector.broadcast %cst_54 : f32 to vector<8x128xf32>
      %156 = arith.addf %155, %154 : vector<8x128xf32>
      %157 = arith.divf %155, %156 : vector<8x128xf32>
      %158 = vector.extract_strided_slice %157 {offsets = [0, 0], sizes = [8, 32], strides = [1, 1]} : vector<8x128xf32> to vector<8x32xf32>
      %159 = vector.extract_strided_slice %157 {offsets = [0, 32], sizes = [8, 32], strides = [1, 1]} : vector<8x128xf32> to vector<8x32xf32>
      %160 = vector.extract_strided_slice %157 {offsets = [0, 96], sizes = [8, 32], strides = [1, 1]} : vector<8x128xf32> to vector<8x32xf32>
      %161 = vector.extract_strided_slice %152 {offsets = [0, 64], sizes = [8, 32], strides = [1, 1]} : vector<8x128xf32> to vector<8x32xf32>
      %162 = math.tanh %161 : vector<8x32xf32>
      %163 = arith.mulf %159, %141 : vector<8x32xf32>
      %164 = arith.mulf %158, %162 : vector<8x32xf32>
      %165 = arith.addf %163, %164 : vector<8x32xf32>
      %166 = math.tanh %165 : vector<8x32xf32>
      %167 = arith.mulf %160, %166 : vector<8x32xf32>
      %168 = arith.index_cast %147 : i32 to index
      %c0_55 = arith.constant 0 : index
      %169 = vector.load %arg12[%168, %c0_55] : memref<64x32xf32, #tpu.memory_space<vmem>>, vector<8x32xf32>
      tpu.vector_store %arg12[%168, %c0_55], %167 {strides = array<i32>} : memref<64x32xf32, #tpu.memory_space<vmem>>, vector<8x32xf32>,
      %c6_i32 = arith.constant 6 : i32
      %c8_i32_56 = arith.constant 8 : i32
      %170 = arith.muli %c6_i32, %c8_i32_56 : i32
      %171 = tpu.assume_multiple %170, 8 : i32
      %172 = arith.index_cast %171 : i32 to index
      %c0_57 = arith.constant 0 : index
      %173 = vector.load %arg11[%172, %c0_57] : memref<64x128xf32, #tpu.memory_space<vmem>>, vector<8x128xf32>
      %174 = arith.truncf %167 : vector<8x32xf32> to vector<8x32xbf16>
      %cst_58 = arith.constant dense<0.000000e+00> : vector<8x128xf32>
      %175 = tpu.matmul %174, %23, %cst_58 {dimension_numbers = #tpu.dot_dimension_numbers<[1], [0], [0], [1], [0, 0, 1, 1], [], []>} : vector<8x32xbf16>, vector<32x128xbf16>, vector<8x128xf32> -> vector<8x128xf32>
      %176 = arith.addf %173, %175 : vector<8x128xf32>
      %177 = arith.negf %176 : vector<8x128xf32>
      %178 = math.exp %177 : vector<8x128xf32>
      %cst_59 = arith.constant 1.000000e+00 : f32
      %179 = vector.broadcast %cst_59 : f32 to vector<8x128xf32>
      %180 = arith.addf %179, %178 : vector<8x128xf32>
      %181 = arith.divf %179, %180 : vector<8x128xf32>
      %182 = vector.extract_strided_slice %181 {offsets = [0, 0], sizes = [8, 32], strides = [1, 1]} : vector<8x128xf32> to vector<8x32xf32>
      %183 = vector.extract_strided_slice %181 {offsets = [0, 32], sizes = [8, 32], strides = [1, 1]} : vector<8x128xf32> to vector<8x32xf32>
      %184 = vector.extract_strided_slice %181 {offsets = [0, 96], sizes = [8, 32], strides = [1, 1]} : vector<8x128xf32> to vector<8x32xf32>
      %185 = vector.extract_strided_slice %176 {offsets = [0, 64], sizes = [8, 32], strides = [1, 1]} : vector<8x128xf32> to vector<8x32xf32>
      %186 = math.tanh %185 : vector<8x32xf32>
      %187 = arith.mulf %183, %165 : vector<8x32xf32>
      %188 = arith.mulf %182, %186 : vector<8x32xf32>
      %189 = arith.addf %187, %188 : vector<8x32xf32>
      %190 = math.tanh %189 : vector<8x32xf32>
      %191 = arith.mulf %184, %190 : vector<8x32xf32>
      %192 = arith.index_cast %171 : i32 to index
      %c0_60 = arith.constant 0 : index
      %193 = vector.load %arg12[%192, %c0_60] : memref<64x32xf32, #tpu.memory_space<vmem>>, vector<8x32xf32>
      tpu.vector_store %arg12[%192, %c0_60], %191 {strides = array<i32>} : memref<64x32xf32, #tpu.memory_space<vmem>>, vector<8x32xf32>,
      %c7_i32 = arith.constant 7 : i32
      %c8_i32_61 = arith.constant 8 : i32
      %194 = arith.muli %c7_i32, %c8_i32_61 : i32
      %195 = tpu.assume_multiple %194, 8 : i32
      %196 = arith.index_cast %195 : i32 to index
      %c0_62 = arith.constant 0 : index
      %197 = vector.load %arg11[%196, %c0_62] : memref<64x128xf32, #tpu.memory_space<vmem>>, vector<8x128xf32>
      %198 = arith.truncf %191 : vector<8x32xf32> to vector<8x32xbf16>
      %cst_63 = arith.constant dense<0.000000e+00> : vector<8x128xf32>
      %199 = tpu.matmul %198, %23, %cst_63 {dimension_numbers = #tpu.dot_dimension_numbers<[1], [0], [0], [1], [0, 0, 1, 1], [], []>} : vector<8x32xbf16>, vector<32x128xbf16>, vector<8x128xf32> -> vector<8x128xf32>
      %200 = arith.addf %197, %199 : vector<8x128xf32>
      %201 = arith.negf %200 : vector<8x128xf32>
      %202 = math.exp %201 : vector<8x128xf32>
      %cst_64 = arith.constant 1.000000e+00 : f32
      %203 = vector.broadcast %cst_64 : f32 to vector<8x128xf32>
      %204 = arith.addf %203, %202 : vector<8x128xf32>
      %205 = arith.divf %203, %204 : vector<8x128xf32>
      %206 = vector.extract_strided_slice %205 {offsets = [0, 0], sizes = [8, 32], strides = [1, 1]} : vector<8x128xf32> to vector<8x32xf32>
      %207 = vector.extract_strided_slice %205 {offsets = [0, 32], sizes = [8, 32], strides = [1, 1]} : vector<8x128xf32> to vector<8x32xf32>
      %208 = vector.extract_strided_slice %205 {offsets = [0, 96], sizes = [8, 32], strides = [1, 1]} : vector<8x128xf32> to vector<8x32xf32>
      %209 = vector.extract_strided_slice %200 {offsets = [0, 64], sizes = [8, 32], strides = [1, 1]} : vector<8x128xf32> to vector<8x32xf32>
      %210 = math.tanh %209 : vector<8x32xf32>
      %211 = arith.mulf %207, %189 : vector<8x32xf32>
      %212 = arith.mulf %206, %210 : vector<8x32xf32>
      %213 = arith.addf %211, %212 : vector<8x32xf32>
      %214 = math.tanh %213 : vector<8x32xf32>
      %215 = arith.mulf %208, %214 : vector<8x32xf32>
      %216 = arith.index_cast %195 : i32 to index
      %c0_65 = arith.constant 0 : index
      %217 = vector.load %arg12[%216, %c0_65] : memref<64x32xf32, #tpu.memory_space<vmem>>, vector<8x32xf32>
      tpu.vector_store %arg12[%216, %c0_65], %215 {strides = array<i32>} : memref<64x32xf32, #tpu.memory_space<vmem>>, vector<8x32xf32>,
      %c8_i32_66 = arith.constant 8 : i32
      %c0_67 = arith.constant 0 : index
      %c0_68 = arith.constant 0 : index
      %218 = vector.load %arg9[%c0_67, %c0_68] : memref<8x32xf32, #tpu.memory_space<vmem>>, vector<8x32xf32>
      tpu.vector_store %arg9[%c0_67, %c0_68], %215 {strides = array<i32>} : memref<8x32xf32, #tpu.memory_space<vmem>>, vector<8x32xf32>,
      %c0_69 = arith.constant 0 : index
      %c0_70 = arith.constant 0 : index
      %219 = vector.load %arg10[%c0_69, %c0_70] : memref<8x32xf32, #tpu.memory_space<vmem>>, vector<8x32xf32>
      tpu.vector_store %arg10[%c0_69, %c0_70], %213 {strides = array<i32>} : memref<8x32xf32, #tpu.memory_space<vmem>>, vector<8x32xf32>,
    } else {
    }
    %c0 = arith.constant 0 : index
    %c0_4 = arith.constant 0 : index
    %8 = vector.load %arg12[%c0, %c0_4] : memref<64x32xf32, #tpu.memory_space<vmem>>, vector<64x32xf32>
    %9 = arith.truncf %8 : vector<64x32xf32> to vector<64x32xbf16>
    %c0_5 = arith.constant 0 : index
    %c0_6 = arith.constant 0 : index
    %10 = vector.load %arg6[%c0_5, %c0_6] : memref<32x128xbf16, #tpu.memory_space<vmem>>, vector<32x128xbf16>
    %cst = arith.constant dense<0.000000e+00> : vector<64x128xf32>
    %11 = tpu.matmul %9, %10, %cst {dimension_numbers = #tpu.dot_dimension_numbers<[1], [0], [0], [1], [0, 0, 1, 1], [], []>} : vector<64x32xbf16>, vector<32x128xbf16>, vector<64x128xf32> -> vector<64x128xf32>
    %c0_7 = arith.constant 0 : index
    %c0_8 = arith.constant 0 : index
    %12 = vector.load %arg7[%c0_7, %c0_8] : memref<1x128xf32, #tpu.memory_space<vmem>>, vector<1x128xf32>
    %13 = vector.broadcast %12 : vector<1x128xf32> to vector<64x128xf32>
    %14 = arith.addf %11, %13 : vector<64x128xf32>
    %c0_9 = arith.constant 0 : index
    %c0_10 = arith.constant 0 : index
    %15 = vector.load %arg8[%c0_9, %c0_10] : memref<64x128xf32, #tpu.memory_space<vmem>>, vector<64x128xf32>
    tpu.vector_store %arg8[%c0_9, %c0_10], %14 {strides = array<i32>} : memref<64x128xf32, #tpu.memory_space<vmem>>, vector<64x128xf32>,
    return
  }
  func.func @transform_0(%arg0: i32, %arg1: i32) -> (i32, i32) {
    %c0_i32 = arith.constant 0 : i32
    %c0_i32_0 = arith.constant 0 : i32
    return %arg0, %c0_i32 : i32, i32
  }
  func.func @transform_1(%arg0: i32, %arg1: i32) -> (i32, i32) {
    %c0_i32 = arith.constant 0 : i32
    %c0_i32_0 = arith.constant 0 : i32
    %c0_i32_1 = arith.constant 0 : i32
    return %c0_i32, %c0_i32_0 : i32, i32
  }
  func.func @transform_2(%arg0: i32, %arg1: i32) -> (i32, i32) {
    %c0_i32 = arith.constant 0 : i32
    %c0_i32_0 = arith.constant 0 : i32
    %c0_i32_1 = arith.constant 0 : i32
    return %c0_i32, %c0_i32_0 : i32, i32
  }
  func.func @transform_3(%arg0: i32, %arg1: i32) -> (i32, i32) {
    %c0_i32 = arith.constant 0 : i32
    %c0_i32_0 = arith.constant 0 : i32
    %c0_i32_1 = arith.constant 0 : i32
    return %c0_i32, %c0_i32_0 : i32, i32
  }
  func.func @transform_4(%arg0: i32, %arg1: i32) -> (i32, i32) {
    %c0_i32 = arith.constant 0 : i32
    %c0_i32_0 = arith.constant 0 : i32
    return %c0_i32, %arg1 : i32, i32
  }
  func.func @transform_5(%arg0: i32, %arg1: i32) -> (i32, i32) {
    %c0_i32 = arith.constant 0 : i32
    %c0_i32_0 = arith.constant 0 : i32
    return %c0_i32, %arg1 : i32, i32
  }
  func.func @transform_6(%arg0: i32, %arg1: i32) -> (i32, i32) {
    %c0_i32 = arith.constant 0 : i32
    return %arg0, %arg1 : i32, i32
  }
}

</mosaic_0001>

<llo_original>
// kernel: tpu_custom_call.1
$region0: #{tpu_custom_call.1}
  #allocation0 [shape = 'u32[]', space=smem, size = 0x4, offset = 0x4, fixed_abs, tag = 'smem constant byte address 0x4 - core index']
  #allocation1 [shape = 'u32[144,128]{1,0:T(1,128)}', space=vmem, size = 0x12000, scoped, tag = 'internal scratch']
  #allocation2 [shape = 'f32[8,32]{1,0:T(8,128)}', space=vmem, size = 0x1000, scoped, tag = 'scratch operand']
  #allocation3 [shape = 'f32[8,32]{1,0:T(8,128)}', space=vmem, size = 0x1000, scoped, tag = 'scratch operand']
  #allocation4 [shape = 'f32[64,128]{1,0:T(8,128)}', space=vmem, size = 0x8000, scoped, tag = 'scratch operand']
  #allocation5 [shape = 'f32[64,32]{1,0:T(8,128)}', space=vmem, size = 0x8000, scoped, tag = 'scratch operand']
  %s0 = inlined_call_operand.vmem [shape: bf16[64,32], index: 0, kind: input, shape index: {}]
  %s1 = inlined_call_operand.vmem [shape: bf16[32,128], index: 1, kind: input, shape index: {}]
  %s2 = inlined_call_operand.vmem [shape: bf16[32,128], index: 2, kind: input, shape index: {}]
  %s3 = inlined_call_operand.vmem [shape: f32[1,128], index: 3, kind: input, shape index: {}]
  %s4 = inlined_call_operand.vmem [shape: bf16[32,128], index: 4, kind: input, shape index: {}]
  %s5 = inlined_call_operand.vmem [shape: f32[1,128], index: 5, kind: input, shape index: {}]
  %s6 = inlined_call_operand.hbm [shape: f32[64,128], index: 6, kind: output, shape index: {}]
  %s7 = sld [smem:[#allocation0]]
  $region42: #{tpu_custom_call.1} parent=0
    _
  %s9 = ssub.s32 1, %s7
  %s10 = scalar_select 0, %s9, %s7
  $region1: #{tpu_custom_call.1} parent=0
    #allocation6 [shape = 'u8[32768]{0}', space=vmem, size = 0x8000, scoped, tag = 'output window, operand 0, single buffered']
    #allocation7 [shape = 's32[1]{0}', space=sflag, size = 0x4, scoped, tag = 'scoped memory for tpu_custom_call.1']
    %11 = vsyncpa [#allocation7], 0
    // Predicated region
    $region2: #{tpu_custom_call.1} parent=1 // pred_check
      _
    $region3: #{tpu_custom_call.1} parent=1 // pred_check_branch
      %13 = sbr.rel (0) target = $region5
    $region4: #{tpu_custom_call.1} parent=1 // pred_region
      _
    $region5: #{tpu_custom_call.1} parent=1 // pred_fallthru
      _
    // Predicated region
    $region6: #{tpu_custom_call.1} parent=1 // pred_check
      _
    $region7: #{tpu_custom_call.1} parent=1 // pred_check_branch
      %15 = sbr.rel (0) target = $region9
    $region8: #{tpu_custom_call.1} parent=1 // pred_region
      _
    $region9: #{tpu_custom_call.1} parent=1 // pred_fallthru
      _
    // Predicated region
    $region10: #{tpu_custom_call.1} parent=1 // pred_check
      _
    $region11: #{tpu_custom_call.1} parent=1 // pred_check_branch
      %17 = sbr.rel (0) target = $region13
    $region12: #{tpu_custom_call.1} parent=1 // pred_region
      _
    $region13: #{tpu_custom_call.1} parent=1 // pred_fallthru
      _
    // Predicated region
    $region14: #{tpu_custom_call.1} parent=1 // pred_check
      _
    $region15: #{tpu_custom_call.1} parent=1 // pred_check_branch
      %19 = sbr.rel (0) target = $region17
    $region16: #{tpu_custom_call.1} parent=1 // pred_region
      _
    $region17: #{tpu_custom_call.1} parent=1 // pred_fallthru
      _
    // Predicated region
    $region18: #{tpu_custom_call.1} parent=1 // pred_check
      _
    $region19: #{tpu_custom_call.1} parent=1 // pred_check_branch
      %21 = sbr.rel (0) target = $region21
    $region20: #{tpu_custom_call.1} parent=1 // pred_region
      _
    $region21: #{tpu_custom_call.1} parent=1 // pred_fallthru
      _
    // Predicated region
    $region22: #{tpu_custom_call.1} parent=1 // pred_check
      _
    $region23: #{tpu_custom_call.1} parent=1 // pred_check_branch
      %23 = sbr.rel (0) target = $region25
    $region24: #{tpu_custom_call.1} parent=1 // pred_region
      _
    $region25: #{tpu_custom_call.1} parent=1 // pred_fallthru
      _
    %p25 = scmp.eq.s32.totalorder 0, 0
    %p26 = scmp.eq.s32.totalorder 0, 0
    %p27 = pnand %p25, %p26
    %p28 = pneg %p27
    // Predicated region
    $region26: #{tpu_custom_call.1} parent=1 // pred_check
      _
    $region27: #{tpu_custom_call.1} parent=1 // pred_check_branch
      %30 = sbr.rel (%p27) target = $region29
    $region28: #{tpu_custom_call.1} parent=1 // pred_region
      %vm31 = vcmask 261120
      %32 = vst.msk [vmem:[#allocation2] sm:$0xff] %vm31, 0.0
      %33 = vst.msk [vmem:[#allocation3] sm:$0xff] %vm31, 0.0
    $region29: #{tpu_custom_call.1} parent=1 // pred_fallthru
      _
    // Predicated region
    $region30: #{tpu_custom_call.1} parent=1 // pred_check
      %p34 = pneg %p26
    $region31: #{tpu_custom_call.1} parent=1 // pred_check_branch
      %36 = sbr.rel (%p34) target = $region33
    $region32: #{tpu_custom_call.1} parent=1 // pred_region
      %v37 = vld [vmem:[%s0] sm:$0xf]
      %v38 = vld [vmem:[%s0 + $0x4] sm:$0xf]
      %v39 = vld [vmem:[%s0 + $0x8] sm:$0xf]
      %v40 = vld [vmem:[%s0 + $0xc] sm:$0xf]
      %v41 = vld [vmem:[%s0 + $0x10] sm:$0xf]
      %v42 = vld [vmem:[%s0 + $0x14] sm:$0xf]
      %v43 = vld [vmem:[%s0 + $0x18] sm:$0xf]
      %v44 = vld [vmem:[%s0 + $0x1c] sm:$0xf]
      %v45 = vld [vmem:[%s1] sm:$0xf]
      %v46 = vld [vmem:[%s1 + $0x4] sm:$0xf]
      %v47 = vld [vmem:[%s1 + $0x8] sm:$0xf]
      %v48 = vld [vmem:[%s1 + $0xc] sm:$0xf]
      %v49 = vld [vmem:[%s3] sm:$0x1]
      %v51 = vlaneseq
      %v52 = vshrl.u32 %v51, 7
      %v53 = vsub.s32 0, %v52
      %v54 = vrot.slane %v49, %v53
      %v64 = vunpack.c.l.b16 %v37
      %v65 = vunpack.c.l.b16 %v38
      %v66 = vunpack.c.l.b16 %v39
      %v67 = vunpack.c.l.b16 %v40
      %v68 = vunpack.c.l.b16 %v41
      %v69 = vunpack.c.l.b16 %v42
      %v70 = vunpack.c.l.b16 %v43
      %v71 = vunpack.c.l.b16 %v44
      %v72 = vpack.c.b16 %v65, %v64
      %v73 = vpack.c.b16 %v67, %v66
      %v74 = vpack.c.b16 %v69, %v68
      %v75 = vpack.c.b16 %v71, %v70
      %v80 = vunpack.c.l.b16 %v45
      %v81 = vunpack.c.l.b16 %v46
      %v82 = vunpack.c.l.b16 %v47
      %v83 = vunpack.c.l.b16 %v48
      %v84 = vpack.c.b16 %v81, %v80
      %v85 = vpack.c.b16 %v83, %v82
      %vm88 = vcmask 261120
      %v90 = vsel %vm88, %v72, 0
      %v93 = vsel %vm88, %v73, 0
      %v96 = vsel %vm88, %v74, 0
      %v99 = vsel %vm88, %v75, 0
      %101 = vmatprep.subr.bf16.mxu0 0
      %102 = vmatpush1.bf16.msra.mxu0 %v84
      %103 = vmatprep.subr.bf16.mxu0 0
      %104 = vmatpush1.bf16.msra.mxu0 %v85
      %105 = vmatprep.subr.bf16.mxu0 0
      %106 = vmatpush1.bf16.msra.mxu0 0
      %107 = vmatprep.subr.bf16.mxu0 0
      %108 = vmatpush1.bf16.msra.mxu0 0
      %109 = vmatprep.subr.bf16.mxu0 0
      %110 = vmatpush1.bf16.msra.mxu0 0
      %111 = vmatprep.subr.bf16.mxu0 0
      %112 = vmatpush1.bf16.msra.mxu0 0
      %113 = vmatprep.subr.bf16.mxu0 0
      %114 = vmatpush1.bf16.msra.mxu0 0
      %115 = vmatprep.subr.bf16.mxu0 0
      %116 = vmatpush1.bf16.msra.mxu0 0
      %117 = vmatprep.subr.bf16.mxu0 0
      %118 = vmatpush1.bf16.msra.mxu0 0
      %119 = vmatprep.subr.bf16.mxu0 0
      %120 = vmatpush1.bf16.msra.mxu0 0
      %121 = vmatprep.subr.bf16.mxu0 0
      %122 = vmatpush1.bf16.msra.mxu0 0
      %123 = vmatprep.subr.bf16.mxu0 0
      %124 = vmatpush1.bf16.msra.mxu0 0
      %125 = vmatprep.subr.bf16.mxu0 0
      %126 = vmatpush1.bf16.msra.mxu0 0
      %127 = vmatprep.subr.bf16.mxu0 0
      %128 = vmatpush1.bf16.msra.mxu0 0
      %129 = vmatprep.subr.bf16.mxu0 0
      %130 = vmatpush1.bf16.msra.mxu0 0
      %131 = vmatprep.subr.bf16.mxu0 0
      %132 = vmatpush1.bf16.msra.mxu0 0
      %133 = vmatprep.mubr.bf16.mxu0 0
      %134 = vmatmul.mubr.bf16.gmra.mrb[0].mxu0 %v90
      %v135 = vpop.f32.mrb[0].mxu0
      %v136 = vadd.f32 %v54, %v135
      %v137 = vpop.f32.mrb[0].mxu0
      %v138 = vpop.f32.mrb[0].mxu0
      %v139 = vadd.f32 %v54, %v138
      %v140 = vpop.f32.mrb[0].mxu0
      %141 = vmatprep.mubr.bf16.mxu0 0
      %142 = vmatmul.mubr.bf16.gmra.mrb[0].mxu0 %v93
      %v143 = vpop.f32.mrb[0].mxu0
      %v144 = vadd.f32 %v54, %v143
      %v145 = vpop.f32.mrb[0].mxu0
      %v146 = vpop.f32.mrb[0].mxu0
      %v147 = vadd.f32 %v54, %v146
      %v148 = vpop.f32.mrb[0].mxu0
      %149 = vmatprep.mubr.bf16.mxu0 0
      %150 = vmatmul.mubr.bf16.gmra.mrb[0].mxu0 %v96
      %v151 = vpop.f32.mrb[0].mxu0
      %v152 = vadd.f32 %v54, %v151
      %v153 = vpop.f32.mrb[0].mxu0
      %v154 = vpop.f32.mrb[0].mxu0
      %v155 = vadd.f32 %v54, %v154
      %v156 = vpop.f32.mrb[0].mxu0
      %157 = vmatprep.mubr.bf16.mxu0 0
      %158 = vmatmul.mubr.bf16.gmra.mrb[0].mxu0 %v99
      %v159 = vpop.f32.mrb[0].mxu0
      %v160 = vadd.f32 %v54, %v159
      %v161 = vpop.f32.mrb[0].mxu0
      %v162 = vpop.f32.mrb[0].mxu0
      %v163 = vadd.f32 %v54, %v162
      %v164 = vpop.f32.mrb[0].mxu0
      %165 = vdwg.mxu0
      %166 = vst [vmem:[#allocation4] sm:$0xff] %v136
      %167 = vst [vmem:[#allocation4 + $0x8] sm:$0xff] %v139
      %168 = vst [vmem:[#allocation4 + $0x10] sm:$0xff] %v144
      %169 = vst [vmem:[#allocation4 + $0x18] sm:$0xff] %v147
      %170 = vst [vmem:[#allocation4 + $0x20] sm:$0xff] %v152
      %171 = vst [vmem:[#allocation4 + $0x28] sm:$0xff] %v155
      %172 = vst [vmem:[#allocation4 + $0x30] sm:$0xff] %v160
      %173 = vst [vmem:[#allocation4 + $0x38] sm:$0xff] %v163
      %v174 = vld [vmem:[%s2] sm:$0xf]
      %v175 = vld [vmem:[%s2 + $0x4] sm:$0xf]
      %v176 = vld [vmem:[%s2 + $0x8] sm:$0xf]
      %v177 = vld [vmem:[%s2 + $0xc] sm:$0xf]
      %v178 = vld [vmem:[#allocation2] sm:$0xff]
      %v179 = vld [vmem:[#allocation3] sm:$0xff]
      %v180 = vld [vmem:[#allocation4] sm:$0xff]
      %v181 = vpack.c.bf16 %v178, %v178
      %v186 = vunpack.c.l.b16 %v174
      %v187 = vunpack.c.l.b16 %v175
      %v188 = vunpack.c.l.b16 %v176
      %v189 = vunpack.c.l.b16 %v177
      %v190 = vpack.c.b16 %v187, %v186
      %v191 = vpack.c.b16 %v189, %v188
      %v195 = vsel %vm88, %v181, 0
      %197 = vmatprep.subr.bf16.mxu0 0
      %198 = vmatpush1.bf16.msra.mxu0 %v190
      %199 = vmatprep.subr.bf16.mxu0 0
      %200 = vmatpush1.bf16.msra.mxu0 %v191
      %201 = vmatprep.subr.bf16.mxu0 0
      %202 = vmatpush1.bf16.msra.mxu0 0
      %203 = vmatprep.subr.bf16.mxu0 0
      %204 = vmatpush1.bf16.msra.mxu0 0
      %205 = vmatprep.subr.bf16.mxu0 0
      %206 = vmatpush1.bf16.msra.mxu0 0
      %207 = vmatprep.subr.bf16.mxu0 0
      %208 = vmatpush1.bf16.msra.mxu0 0
      %209 = vmatprep.subr.bf16.mxu0 0
      %210 = vmatpush1.bf16.msra.mxu0 0
      %211 = vmatprep.subr.bf16.mxu0 0
      %212 = vmatpush1.bf16.msra.mxu0 0
      %213 = vmatprep.subr.bf16.mxu0 0
      %214 = vmatpush1.bf16.msra.mxu0 0
      %215 = vmatprep.subr.bf16.mxu0 0
      %216 = vmatpush1.bf16.msra.mxu0 0
      %217 = vmatprep.subr.bf16.mxu0 0
      %218 = vmatpush1.bf16.msra.mxu0 0
      %219 = vmatprep.subr.bf16.mxu0 0
      %220 = vmatpush1.bf16.msra.mxu0 0
      %221 = vmatprep.subr.bf16.mxu0 0
      %222 = vmatpush1.bf16.msra.mxu0 0
      %223 = vmatprep.subr.bf16.mxu0 0
      %224 = vmatpush1.bf16.msra.mxu0 0
      %225 = vmatprep.subr.bf16.mxu0 0
      %226 = vmatpush1.bf16.msra.mxu0 0
      %227 = vmatprep.subr.bf16.mxu0 0
      %228 = vmatpush1.bf16.msra.mxu0 0
      %229 = vmatprep.mubr.bf16.mxu0 0
      %230 = vmatmul.mubr.bf16.gmra.mrb[0].mxu0 %v195
      %v231 = vpop.f32.mrb[0].mxu0
      %v232 = vadd.f32 0.0, %v231
      %v233 = vpop.f32.mrb[0].mxu0
      %v234 = vpop.f32.mrb[0].mxu0
      %v235 = vpop.f32.mrb[0].mxu0
      %236 = vdwg.mxu0
      %v237 = vadd.f32 %v180, %v232
      %v238 = vxor.u32 %v237, 2147483648
      %v239 = vmul.f32 %v238, 1.442695
      %v240 = vpow.pop %v239
      %v241 = vadd.f32 %v240, 1.0
      %v242 = vrcp.pop %v241
      %v243 = vmul.f32 1.0, %v242
      %v244 = vtanh.pop %v237
      %246 = vrot.lane.b32.xlu0 %v179, 32
      %v247 = vpop.permute.xlu0 %246
      %v249 = vmul.f32 %v243, %v247
      %251 = vrot.lane.b32.xlu0 %v244, 64
      %v252 = vpop.permute.xlu0 %251
      %v254 = vmul.f32 %v243, %v252
      %256 = vrot.lane.b32.xlu0 %v254, 32
      %v257 = vpop.permute.xlu0 %256
      %v259 = vadd.f32 %v249, %v257
      %v260 = vtanh.pop %v259
      %262 = vrot.lane.b32.xlu0 %v260, 64
      %v263 = vpop.permute.xlu0 %262
      %v265 = vmul.f32 %v243, %v263
      %267 = vrot.lane.b32.xlu0 %v265, 32
      %v268 = vpop.permute.xlu0 %267
      %270 = vst.msk [vmem:[#allocation5] sm:$0xff] %vm88, %v268
      %s271 = scalar_lea.vmem [#allocation4], 8
      %v272 = vld [vmem:[%s271] sm:$0xff]
      %v273 = vpack.c.bf16 %v265, %v265
      %275 = vrot.lane.b32.xlu0 %v273, 32
      %v276 = vpop.permute.xlu0 %275
      %v278 = vsel %vm88, %v276, 0
      %280 = vmatprep.subr.bf16.mxu0 0
      %281 = vmatpush1.bf16.msra.mxu0 %v190
      %282 = vmatprep.subr.bf16.mxu0 0
      %283 = vmatpush1.bf16.msra.mxu0 %v191
      %284 = vmatprep.subr.bf16.mxu0 0
      %285 = vmatpush1.bf16.msra.mxu0 0
      %286 = vmatprep.subr.bf16.mxu0 0
      %287 = vmatpush1.bf16.msra.mxu0 0
      %288 = vmatprep.subr.bf16.mxu0 0
      %289 = vmatpush1.bf16.msra.mxu0 0
      %290 = vmatprep.subr.bf16.mxu0 0
      %291 = vmatpush1.bf16.msra.mxu0 0
      %292 = vmatprep.subr.bf16.mxu0 0
      %293 = vmatpush1.bf16.msra.mxu0 0
      %294 = vmatprep.subr.bf16.mxu0 0
      %295 = vmatpush1.bf16.msra.mxu0 0
      %296 = vmatprep.subr.bf16.mxu0 0
      %297 = vmatpush1.bf16.msra.mxu0 0
      %298 = vmatprep.subr.bf16.mxu0 0
      %299 = vmatpush1.bf16.msra.mxu0 0
      %300 = vmatprep.subr.bf16.mxu0 0
      %301 = vmatpush1.bf16.msra.mxu0 0
      %302 = vmatprep.subr.bf16.mxu0 0
      %303 = vmatpush1.bf16.msra.mxu0 0
      %304 = vmatprep.subr.bf16.mxu0 0
      %305 = vmatpush1.bf16.msra.mxu0 0
      %306 = vmatprep.subr.bf16.mxu0 0
      %307 = vmatpush1.bf16.msra.mxu0 0
      %308 = vmatprep.subr.bf16.mxu0 0
      %309 = vmatpush1.bf16.msra.mxu0 0
      %310 = vmatprep.subr.bf16.mxu0 0
      %311 = vmatpush1.bf16.msra.mxu0 0
      %312 = vmatprep.mubr.bf16.mxu0 0
      %313 = vmatmul.mubr.bf16.gmra.mrb[0].mxu0 %v278
      %v314 = vpop.f32.mrb[0].mxu0
      %v315 = vadd.f32 0.0, %v314
      %v316 = vpop.f32.mrb[0].mxu0
      %v317 = vpop.f32.mrb[0].mxu0
      %v318 = vpop.f32.mrb[0].mxu0
      %319 = vdwg.mxu0
      %v320 = vadd.f32 %v272, %v315
      %v321 = vxor.u32 %v320, 2147483648
      %v322 = vmul.f32 %v321, 1.442695
      %v323 = vpow.pop %v322
      %v324 = vadd.f32 %v323, 1.0
      %v325 = vrcp.pop %v324
      %v326 = vmul.f32 1.0, %v325
      %v327 = vtanh.pop %v320
      %v328 = vmul.f32 %v326, %v259
      %330 = vrot.lane.b32.xlu0 %v327, 64
      %v331 = vpop.permute.xlu0 %330
      %v333 = vmul.f32 %v326, %v331
      %335 = vrot.lane.b32.xlu0 %v333, 32
      %v336 = vpop.permute.xlu0 %335
      %v338 = vadd.f32 %v328, %v336
      %v339 = vtanh.pop %v338
      %341 = vrot.lane.b32.xlu0 %v339, 64
      %v342 = vpop.permute.xlu0 %341
      %v344 = vmul.f32 %v326, %v342
      %346 = vrot.lane.b32.xlu0 %v344, 32
      %v347 = vpop.permute.xlu0 %346
      %s349 = scalar_lea.vmem [#allocation5], 8
      %350 = vst.msk [vmem:[%s349] sm:$0xff] %vm88, %v347
      %s351 = scalar_lea.vmem [#allocation4], 16
      %v352 = vld [vmem:[%s351] sm:$0xff]
      %v353 = vpack.c.bf16 %v344, %v344
      %355 = vrot.lane.b32.xlu0 %v353, 32
      %v356 = vpop.permute.xlu0 %355
      %v358 = vsel %vm88, %v356, 0
      %360 = vmatprep.subr.bf16.mxu0 0
      %361 = vmatpush1.bf16.msra.mxu0 %v190
      %362 = vmatprep.subr.bf16.mxu0 0
      %363 = vmatpush1.bf16.msra.mxu0 %v191
      %364 = vmatprep.subr.bf16.mxu0 0
      %365 = vmatpush1.bf16.msra.mxu0 0
      %366 = vmatprep.subr.bf16.mxu0 0
      %367 = vmatpush1.bf16.msra.mxu0 0
      %368 = vmatprep.subr.bf16.mxu0 0
      %369 = vmatpush1.bf16.msra.mxu0 0
      %370 = vmatprep.subr.bf16.mxu0 0
      %371 = vmatpush1.bf16.msra.mxu0 0
      %372 = vmatprep.subr.bf16.mxu0 0
      %373 = vmatpush1.bf16.msra.mxu0 0
      %374 = vmatprep.subr.bf16.mxu0 0
      %375 = vmatpush1.bf16.msra.mxu0 0
      %376 = vmatprep.subr.bf16.mxu0 0
      %377 = vmatpush1.bf16.msra.mxu0 0
      %378 = vmatprep.subr.bf16.mxu0 0
      %379 = vmatpush1.bf16.msra.mxu0 0
      %380 = vmatprep.subr.bf16.mxu0 0
      %381 = vmatpush1.bf16.msra.mxu0 0
      %382 = vmatprep.subr.bf16.mxu0 0
      %383 = vmatpush1.bf16.msra.mxu0 0
      %384 = vmatprep.subr.bf16.mxu0 0
      %385 = vmatpush1.bf16.msra.mxu0 0
      %386 = vmatprep.subr.bf16.mxu0 0
      %387 = vmatpush1.bf16.msra.mxu0 0
      %388 = vmatprep.subr.bf16.mxu0 0
      %389 = vmatpush1.bf16.msra.mxu0 0
      %390 = vmatprep.subr.bf16.mxu0 0
      %391 = vmatpush1.bf16.msra.mxu0 0
      %392 = vmatprep.mubr.bf16.mxu0 0
      %393 = vmatmul.mubr.bf16.gmra.mrb[0].mxu0 %v358
      %v394 = vpop.f32.mrb[0].mxu0
      %v395 = vadd.f32 0.0, %v394
      %v396 = vpop.f32.mrb[0].mxu0
      %v397 = vpop.f32.mrb[0].mxu0
      %v398 = vpop.f32.mrb[0].mxu0
      %399 = vdwg.mxu0
      %v400 = vadd.f32 %v352, %v395
      %v401 = vxor.u32 %v400, 2147483648
      %v402 = vmul.f32 %v401, 1.442695
      %v403 = vpow.pop %v402
      %v404 = vadd.f32 %v403, 1.0
      %v405 = vrcp.pop %v404
      %v406 = vmul.f32 1.0, %v405
      %v407 = vtanh.pop %v400
      %v408 = vmul.f32 %v406, %v338
      %410 = vrot.lane.b32.xlu0 %v407, 64
      %v411 = vpop.permute.xlu0 %410
      %v413 = vmul.f32 %v406, %v411
      %415 = vrot.lane.b32.xlu0 %v413, 32
      %v416 = vpop.permute.xlu0 %415
      %v418 = vadd.f32 %v408, %v416
      %v419 = vtanh.pop %v418
      %421 = vrot.lane.b32.xlu0 %v419, 64
      %v422 = vpop.permute.xlu0 %421
      %v424 = vmul.f32 %v406, %v422
      %426 = vrot.lane.b32.xlu0 %v424, 32
      %v427 = vpop.permute.xlu0 %426
      %s429 = scalar_lea.vmem [#allocation5], 16
      %430 = vst.msk [vmem:[%s429] sm:$0xff] %vm88, %v427
      %s431 = scalar_lea.vmem [#allocation4], 24
      %v432 = vld [vmem:[%s431] sm:$0xff]
      %v433 = vpack.c.bf16 %v424, %v424
      %435 = vrot.lane.b32.xlu0 %v433, 32
      %v436 = vpop.permute.xlu0 %435
      %v438 = vsel %vm88, %v436, 0
      %440 = vmatprep.subr.bf16.mxu0 0
      %441 = vmatpush1.bf16.msra.mxu0 %v190
      %442 = vmatprep.subr.bf16.mxu0 0
      %443 = vmatpush1.bf16.msra.mxu0 %v191
      %444 = vmatprep.subr.bf16.mxu0 0
      %445 = vmatpush1.bf16.msra.mxu0 0
      %446 = vmatprep.subr.bf16.mxu0 0
      %447 = vmatpush1.bf16.msra.mxu0 0
      %448 = vmatprep.subr.bf16.mxu0 0
      %449 = vmatpush1.bf16.msra.mxu0 0
      %450 = vmatprep.subr.bf16.mxu0 0
      %451 = vmatpush1.bf16.msra.mxu0 0
      %452 = vmatprep.subr.bf16.mxu0 0
      %453 = vmatpush1.bf16.msra.mxu0 0
      %454 = vmatprep.subr.bf16.mxu0 0
      %455 = vmatpush1.bf16.msra.mxu0 0
      %456 = vmatprep.subr.bf16.mxu0 0
      %457 = vmatpush1.bf16.msra.mxu0 0
      %458 = vmatprep.subr.bf16.mxu0 0
      %459 = vmatpush1.bf16.msra.mxu0 0
      %460 = vmatprep.subr.bf16.mxu0 0
      %461 = vmatpush1.bf16.msra.mxu0 0
      %462 = vmatprep.subr.bf16.mxu0 0
      %463 = vmatpush1.bf16.msra.mxu0 0
      %464 = vmatprep.subr.bf16.mxu0 0
      %465 = vmatpush1.bf16.msra.mxu0 0
      %466 = vmatprep.subr.bf16.mxu0 0
      %467 = vmatpush1.bf16.msra.mxu0 0
      %468 = vmatprep.subr.bf16.mxu0 0
      %469 = vmatpush1.bf16.msra.mxu0 0
      %470 = vmatprep.subr.bf16.mxu0 0
      %471 = vmatpush1.bf16.msra.mxu0 0
      %472 = vmatprep.mubr.bf16.mxu0 0
      %473 = vmatmul.mubr.bf16.gmra.mrb[0].mxu0 %v438
      %v474 = vpop.f32.mrb[0].mxu0
      %v475 = vadd.f32 0.0, %v474
      %v476 = vpop.f32.mrb[0].mxu0
      %v477 = vpop.f32.mrb[0].mxu0
      %v478 = vpop.f32.mrb[0].mxu0
      %479 = vdwg.mxu0
      %v480 = vadd.f32 %v432, %v475
      %v481 = vxor.u32 %v480, 2147483648
      %v482 = vmul.f32 %v481, 1.442695
      %v483 = vpow.pop %v482
      %v484 = vadd.f32 %v483, 1.0
      %v485 = vrcp.pop %v484
      %v486 = vmul.f32 1.0, %v485
      %v487 = vtanh.pop %v480
      %v488 = vmul.f32 %v486, %v418
      %490 = vrot.lane.b32.xlu0 %v487, 64
      %v491 = vpop.permute.xlu0 %490
      %v493 = vmul.f32 %v486, %v491
      %495 = vrot.lane.b32.xlu0 %v493, 32
      %v496 = vpop.permute.xlu0 %495
      %v498 = vadd.f32 %v488, %v496
      %v499 = vtanh.pop %v498
      %501 = vrot.lane.b32.xlu0 %v499, 64
      %v502 = vpop.permute.xlu0 %501
      %v504 = vmul.f32 %v486, %v502
      %506 = vrot.lane.b32.xlu0 %v504, 32
      %v507 = vpop.permute.xlu0 %506
      %s509 = scalar_lea.vmem [#allocation5], 24
      %510 = vst.msk [vmem:[%s509] sm:$0xff] %vm88, %v507
      %s511 = scalar_lea.vmem [#allocation4], 32
      %v512 = vld [vmem:[%s511] sm:$0xff]
      %v513 = vpack.c.bf16 %v504, %v504
      %515 = vrot.lane.b32.xlu0 %v513, 32
      %v516 = vpop.permute.xlu0 %515
      %v518 = vsel %vm88, %v516, 0
      %520 = vmatprep.subr.bf16.mxu0 0
      %521 = vmatpush1.bf16.msra.mxu0 %v190
      %522 = vmatprep.subr.bf16.mxu0 0
      %523 = vmatpush1.bf16.msra.mxu0 %v191
      %524 = vmatprep.subr.bf16.mxu0 0
      %525 = vmatpush1.bf16.msra.mxu0 0
      %526 = vmatprep.subr.bf16.mxu0 0
      %527 = vmatpush1.bf16.msra.mxu0 0
      %528 = vmatprep.subr.bf16.mxu0 0
      %529 = vmatpush1.bf16.msra.mxu0 0
      %530 = vmatprep.subr.bf16.mxu0 0
      %531 = vmatpush1.bf16.msra.mxu0 0
      %532 = vmatprep.subr.bf16.mxu0 0
      %533 = vmatpush1.bf16.msra.mxu0 0
      %534 = vmatprep.subr.bf16.mxu0 0
      %535 = vmatpush1.bf16.msra.mxu0 0
      %536 = vmatprep.subr.bf16.mxu0 0
      %537 = vmatpush1.bf16.msra.mxu0 0
      %538 = vmatprep.subr.bf16.mxu0 0
      %539 = vmatpush1.bf16.msra.mxu0 0
      %540 = vmatprep.subr.bf16.mxu0 0
      %541 = vmatpush1.bf16.msra.mxu0 0
      %542 = vmatprep.subr.bf16.mxu0 0
      %543 = vmatpush1.bf16.msra.mxu0 0
      %544 = vmatprep.subr.bf16.mxu0 0
      %545 = vmatpush1.bf16.msra.mxu0 0
      %546 = vmatprep.subr.bf16.mxu0 0
      %547 = vmatpush1.bf16.msra.mxu0 0
      %548 = vmatprep.subr.bf16.mxu0 0
      %549 = vmatpush1.bf16.msra.mxu0 0
      %550 = vmatprep.subr.bf16.mxu0 0
      %551 = vmatpush1.bf16.msra.mxu0 0
      %552 = vmatprep.mubr.bf16.mxu0 0
      %553 = vmatmul.mubr.bf16.gmra.mrb[0].mxu0 %v518
      %v554 = vpop.f32.mrb[0].mxu0
      %v555 = vadd.f32 0.0, %v554
      %v556 = vpop.f32.mrb[0].mxu0
      %v557 = vpop.f32.mrb[0].mxu0
      %v558 = vpop.f32.mrb[0].mxu0
      %559 = vdwg.mxu0
      %v560 = vadd.f32 %v512, %v555
      %v561 = vxor.u32 %v560, 2147483648
      %v562 = vmul.f32 %v561, 1.442695
      %v563 = vpow.pop %v562
      %v564 = vadd.f32 %v563, 1.0
      %v565 = vrcp.pop %v564
      %v566 = vmul.f32 1.0, %v565
      %v567 = vtanh.pop %v560
      %v568 = vmul.f32 %v566, %v498
      %570 = vrot.lane.b32.xlu0 %v567, 64
      %v571 = vpop.permute.xlu0 %570
      %v573 = vmul.f32 %v566, %v571
      %575 = vrot.lane.b32.xlu0 %v573, 32
      %v576 = vpop.permute.xlu0 %575
      %v578 = vadd.f32 %v568, %v576
      %v579 = vtanh.pop %v578
      %581 = vrot.lane.b32.xlu0 %v579, 64
      %v582 = vpop.permute.xlu0 %581
      %v584 = vmul.f32 %v566, %v582
      %586 = vrot.lane.b32.xlu0 %v584, 32
      %v587 = vpop.permute.xlu0 %586
      %s589 = scalar_lea.vmem [#allocation5], 32
      %590 = vst.msk [vmem:[%s589] sm:$0xff] %vm88, %v587
      %s591 = scalar_lea.vmem [#allocation4], 40
      %v592 = vld [vmem:[%s591] sm:$0xff]
      %v593 = vpack.c.bf16 %v584, %v584
      %595 = vrot.lane.b32.xlu0 %v593, 32
      %v596 = vpop.permute.xlu0 %595
      %v598 = vsel %vm88, %v596, 0
      %600 = vmatprep.subr.bf16.mxu0 0
      %601 = vmatpush1.bf16.msra.mxu0 %v190
      %602 = vmatprep.subr.bf16.mxu0 0
      %603 = vmatpush1.bf16.msra.mxu0 %v191
      %604 = vmatprep.subr.bf16.mxu0 0
      %605 = vmatpush1.bf16.msra.mxu0 0
      %606 = vmatprep.subr.bf16.mxu0 0
      %607 = vmatpush1.bf16.msra.mxu0 0
      %608 = vmatprep.subr.bf16.mxu0 0
      %609 = vmatpush1.bf16.msra.mxu0 0
      %610 = vmatprep.subr.bf16.mxu0 0
      %611 = vmatpush1.bf16.msra.mxu0 0
      %612 = vmatprep.subr.bf16.mxu0 0
      %613 = vmatpush1.bf16.msra.mxu0 0
      %614 = vmatprep.subr.bf16.mxu0 0
      %615 = vmatpush1.bf16.msra.mxu0 0
      %616 = vmatprep.subr.bf16.mxu0 0
      %617 = vmatpush1.bf16.msra.mxu0 0
      %618 = vmatprep.subr.bf16.mxu0 0
      %619 = vmatpush1.bf16.msra.mxu0 0
      %620 = vmatprep.subr.bf16.mxu0 0
      %621 = vmatpush1.bf16.msra.mxu0 0
      %622 = vmatprep.subr.bf16.mxu0 0
      %623 = vmatpush1.bf16.msra.mxu0 0
      %624 = vmatprep.subr.bf16.mxu0 0
      %625 = vmatpush1.bf16.msra.mxu0 0
      %626 = vmatprep.subr.bf16.mxu0 0
      %627 = vmatpush1.bf16.msra.mxu0 0
      %628 = vmatprep.subr.bf16.mxu0 0
      %629 = vmatpush1.bf16.msra.mxu0 0
      %630 = vmatprep.subr.bf16.mxu0 0
      %631 = vmatpush1.bf16.msra.mxu0 0
      %632 = vmatprep.mubr.bf16.mxu0 0
      %633 = vmatmul.mubr.bf16.gmra.mrb[0].mxu0 %v598
      %v634 = vpop.f32.mrb[0].mxu0
      %v635 = vadd.f32 0.0, %v634
      %v636 = vpop.f32.mrb[0].mxu0
      %v637 = vpop.f32.mrb[0].mxu0
      %v638 = vpop.f32.mrb[0].mxu0
      %639 = vdwg.mxu0
      %v640 = vadd.f32 %v592, %v635
      %v641 = vxor.u32 %v640, 2147483648
      %v642 = vmul.f32 %v641, 1.442695
      %v643 = vpow.pop %v642
      %v644 = vadd.f32 %v643, 1.0
      %v645 = vrcp.pop %v644
      %v646 = vmul.f32 1.0, %v645
      %v647 = vtanh.pop %v640
      %v648 = vmul.f32 %v646, %v578
      %650 = vrot.lane.b32.xlu0 %v647, 64
      %v651 = vpop.permute.xlu0 %650
      %v653 = vmul.f32 %v646, %v651
      %655 = vrot.lane.b32.xlu0 %v653, 32
      %v656 = vpop.permute.xlu0 %655
      %v658 = vadd.f32 %v648, %v656
      %v659 = vtanh.pop %v658
      %661 = vrot.lane.b32.xlu0 %v659, 64
      %v662 = vpop.permute.xlu0 %661
      %v664 = vmul.f32 %v646, %v662
      %666 = vrot.lane.b32.xlu0 %v664, 32
      %v667 = vpop.permute.xlu0 %666
      %s669 = scalar_lea.vmem [#allocation5], 40
      %670 = vst.msk [vmem:[%s669] sm:$0xff] %vm88, %v667
      %s671 = scalar_lea.vmem [#allocation4], 48
      %v672 = vld [vmem:[%s671] sm:$0xff]
      %v673 = vpack.c.bf16 %v664, %v664
      %675 = vrot.lane.b32.xlu0 %v673, 32
      %v676 = vpop.permute.xlu0 %675
      %v678 = vsel %vm88, %v676, 0
      %680 = vmatprep.subr.bf16.mxu0 0
      %681 = vmatpush1.bf16.msra.mxu0 %v190
      %682 = vmatprep.subr.bf16.mxu0 0
      %683 = vmatpush1.bf16.msra.mxu0 %v191
      %684 = vmatprep.subr.bf16.mxu0 0
      %685 = vmatpush1.bf16.msra.mxu0 0
      %686 = vmatprep.subr.bf16.mxu0 0
      %687 = vmatpush1.bf16.msra.mxu0 0
      %688 = vmatprep.subr.bf16.mxu0 0
      %689 = vmatpush1.bf16.msra.mxu0 0
      %690 = vmatprep.subr.bf16.mxu0 0
      %691 = vmatpush1.bf16.msra.mxu0 0
      %692 = vmatprep.subr.bf16.mxu0 0
      %693 = vmatpush1.bf16.msra.mxu0 0
      %694 = vmatprep.subr.bf16.mxu0 0
      %695 = vmatpush1.bf16.msra.mxu0 0
      %696 = vmatprep.subr.bf16.mxu0 0
      %697 = vmatpush1.bf16.msra.mxu0 0
      %698 = vmatprep.subr.bf16.mxu0 0
      %699 = vmatpush1.bf16.msra.mxu0 0
      %700 = vmatprep.subr.bf16.mxu0 0
      %701 = vmatpush1.bf16.msra.mxu0 0
      %702 = vmatprep.subr.bf16.mxu0 0
      %703 = vmatpush1.bf16.msra.mxu0 0
      %704 = vmatprep.subr.bf16.mxu0 0
      %705 = vmatpush1.bf16.msra.mxu0 0
      %706 = vmatprep.subr.bf16.mxu0 0
      %707 = vmatpush1.bf16.msra.mxu0 0
      %708 = vmatprep.subr.bf16.mxu0 0
      %709 = vmatpush1.bf16.msra.mxu0 0
      %710 = vmatprep.subr.bf16.mxu0 0
      %711 = vmatpush1.bf16.msra.mxu0 0
      %712 = vmatprep.mubr.bf16.mxu0 0
      %713 = vmatmul.mubr.bf16.gmra.mrb[0].mxu0 %v678
      %v714 = vpop.f32.mrb[0].mxu0
      %v715 = vadd.f32 0.0, %v714
      %v716 = vpop.f32.mrb[0].mxu0
      %v717 = vpop.f32.mrb[0].mxu0
      %v718 = vpop.f32.mrb[0].mxu0
      %719 = vdwg.mxu0
      %v720 = vadd.f32 %v672, %v715
      %v721 = vxor.u32 %v720, 2147483648
      %v722 = vmul.f32 %v721, 1.442695
      %v723 = vpow.pop %v722
      %v724 = vadd.f32 %v723, 1.0
      %v725 = vrcp.pop %v724
      %v726 = vmul.f32 1.0, %v725
      %v727 = vtanh.pop %v720
      %v728 = vmul.f32 %v726, %v658
      %730 = vrot.lane.b32.xlu0 %v727, 64
      %v731 = vpop.permute.xlu0 %730
      %v733 = vmul.f32 %v726, %v731
      %735 = vrot.lane.b32.xlu0 %v733, 32
      %v736 = vpop.permute.xlu0 %735
      %v738 = vadd.f32 %v728, %v736
      %v739 = vtanh.pop %v738
      %741 = vrot.lane.b32.xlu0 %v739, 64
      %v742 = vpop.permute.xlu0 %741
      %v744 = vmul.f32 %v726, %v742
      %746 = vrot.lane.b32.xlu0 %v744, 32
      %v747 = vpop.permute.xlu0 %746
      %s749 = scalar_lea.vmem [#allocation5], 48
      %750 = vst.msk [vmem:[%s749] sm:$0xff] %vm88, %v747
      %s751 = scalar_lea.vmem [#allocation4], 56
      %v752 = vld [vmem:[%s751] sm:$0xff]
      %v753 = vpack.c.bf16 %v744, %v744
      %755 = vrot.lane.b32.xlu0 %v753, 32
      %v756 = vpop.permute.xlu0 %755
      %v758 = vsel %vm88, %v756, 0
      %760 = vmatprep.subr.bf16.mxu0 0
      %761 = vmatpush1.bf16.msra.mxu0 %v190
      %762 = vmatprep.subr.bf16.mxu0 0
      %763 = vmatpush1.bf16.msra.mxu0 %v191
      %764 = vmatprep.subr.bf16.mxu0 0
      %765 = vmatpush1.bf16.msra.mxu0 0
      %766 = vmatprep.subr.bf16.mxu0 0
      %767 = vmatpush1.bf16.msra.mxu0 0
      %768 = vmatprep.subr.bf16.mxu0 0
      %769 = vmatpush1.bf16.msra.mxu0 0
      %770 = vmatprep.subr.bf16.mxu0 0
      %771 = vmatpush1.bf16.msra.mxu0 0
      %772 = vmatprep.subr.bf16.mxu0 0
      %773 = vmatpush1.bf16.msra.mxu0 0
      %774 = vmatprep.subr.bf16.mxu0 0
      %775 = vmatpush1.bf16.msra.mxu0 0
      %776 = vmatprep.subr.bf16.mxu0 0
      %777 = vmatpush1.bf16.msra.mxu0 0
      %778 = vmatprep.subr.bf16.mxu0 0
      %779 = vmatpush1.bf16.msra.mxu0 0
      %780 = vmatprep.subr.bf16.mxu0 0
      %781 = vmatpush1.bf16.msra.mxu0 0
      %782 = vmatprep.subr.bf16.mxu0 0
      %783 = vmatpush1.bf16.msra.mxu0 0
      %784 = vmatprep.subr.bf16.mxu0 0
      %785 = vmatpush1.bf16.msra.mxu0 0
      %786 = vmatprep.subr.bf16.mxu0 0
      %787 = vmatpush1.bf16.msra.mxu0 0
      %788 = vmatprep.subr.bf16.mxu0 0
      %789 = vmatpush1.bf16.msra.mxu0 0
      %790 = vmatprep.subr.bf16.mxu0 0
      %791 = vmatpush1.bf16.msra.mxu0 0
      %792 = vmatprep.mubr.bf16.mxu0 0
      %793 = vmatmul.mubr.bf16.gmra.mrb[0].mxu0 %v758
      %v794 = vpop.f32.mrb[0].mxu0
      %v795 = vadd.f32 0.0, %v794
      %v796 = vpop.f32.mrb[0].mxu0
      %v797 = vpop.f32.mrb[0].mxu0
      %v798 = vpop.f32.mrb[0].mxu0
      %799 = vdwg.mxu0
      %v800 = vadd.f32 %v752, %v795
      %v801 = vxor.u32 %v800, 2147483648
      %v802 = vmul.f32 %v801, 1.442695
      %v803 = vpow.pop %v802
      %v804 = vadd.f32 %v803, 1.0
      %v805 = vrcp.pop %v804
      %v806 = vmul.f32 1.0, %v805
      %v807 = vtanh.pop %v800
      %v808 = vmul.f32 %v806, %v738
      %810 = vrot.lane.b32.xlu0 %v807, 64
      %v811 = vpop.permute.xlu0 %810
      %v813 = vmul.f32 %v806, %v811
      %815 = vrot.lane.b32.xlu0 %v813, 32
      %v816 = vpop.permute.xlu0 %815
      %v818 = vadd.f32 %v808, %v816
      %v819 = vtanh.pop %v818
      %821 = vrot.lane.b32.xlu0 %v819, 64
      %v822 = vpop.permute.xlu0 %821
      %v824 = vmul.f32 %v806, %v822
      %826 = vrot.lane.b32.xlu0 %v824, 32
      %v827 = vpop.permute.xlu0 %826
      %s829 = scalar_lea.vmem [#allocation5], 56
      %830 = vst.msk [vmem:[%s829] sm:$0xff] %vm88, %v827
      %831 = vst.msk [vmem:[#allocation2] sm:$0xff] %vm88, %v827
      %833 = vrot.lane.b32.xlu0 %v818, 96
      %v834 = vpop.permute.xlu0 %833
      %836 = vst.msk [vmem:[#allocation3] sm:$0xff] %vm88, %v834
    $region33: #{tpu_custom_call.1} parent=1 // pred_fallthru
      _
    %v837 = vld [vmem:[#allocation5] sm:$0xff]
    %v838 = vld [vmem:[#allocation5 + $0x8] sm:$0xff]
    %v839 = vld [vmem:[#allocation5 + $0x10] sm:$0xff]
    %v840 = vld [vmem:[#allocation5 + $0x18] sm:$0xff]
    %v841 = vld [vmem:[#allocation5 + $0x20] sm:$0xff]
    %v842 = vld [vmem:[#allocation5 + $0x28] sm:$0xff]
    %v843 = vld [vmem:[#allocation5 + $0x30] sm:$0xff]
    %v844 = vld [vmem:[#allocation5 + $0x38] sm:$0xff]
    %v845 = vpack.c.bf16 %v838, %v837
    %v846 = vpack.c.bf16 %v840, %v839
    %v847 = vpack.c.bf16 %v842, %v841
    %v848 = vpack.c.bf16 %v844, %v843
    %v849 = vld [vmem:[%s4] sm:$0xf]
    %v850 = vld [vmem:[%s4 + $0x4] sm:$0xf]
    %v851 = vld [vmem:[%s4 + $0x8] sm:$0xf]
    %v852 = vld [vmem:[%s4 + $0xc] sm:$0xf]
    %v853 = vld [vmem:[%s5] sm:$0x1]
    %v855 = vlaneseq
    %v856 = vshrl.u32 %v855, 7
    %v857 = vsub.s32 0, %v856
    %v858 = vrot.slane %v853, %v857
    %v864 = vunpack.c.l.b16 %v849
    %v865 = vunpack.c.l.b16 %v850
    %v866 = vunpack.c.l.b16 %v851
    %v867 = vunpack.c.l.b16 %v852
    %v868 = vpack.c.b16 %v865, %v864
    %v869 = vpack.c.b16 %v867, %v866
    %vm872 = vcmask 261120
    %v874 = vsel %vm872, %v845, 0
    %v877 = vsel %vm872, %v846, 0
    %v880 = vsel %vm872, %v847, 0
    %v883 = vsel %vm872, %v848, 0
    %885 = vmatprep.subr.bf16.mxu0 0
    %886 = vmatpush1.bf16.msra.mxu0 %v868
    %887 = vmatprep.subr.bf16.mxu0 0
    %888 = vmatpush1.bf16.msra.mxu0 %v869
    %889 = vmatprep.subr.bf16.mxu0 0
    %890 = vmatpush1.bf16.msra.mxu0 0
    %891 = vmatprep.subr.bf16.mxu0 0
    %892 = vmatpush1.bf16.msra.mxu0 0
    %893 = vmatprep.subr.bf16.mxu0 0
    %894 = vmatpush1.bf16.msra.mxu0 0
    %895 = vmatprep.subr.bf16.mxu0 0
    %896 = vmatpush1.bf16.msra.mxu0 0
    %897 = vmatprep.subr.bf16.mxu0 0
    %898 = vmatpush1.bf16.msra.mxu0 0
    %899 = vmatprep.subr.bf16.mxu0 0
    %900 = vmatpush1.bf16.msra.mxu0 0
    %901 = vmatprep.subr.bf16.mxu0 0
    %902 = vmatpush1.bf16.msra.mxu0 0
    %903 = vmatprep.subr.bf16.mxu0 0
    %904 = vmatpush1.bf16.msra.mxu0 0
    %905 = vmatprep.subr.bf16.mxu0 0
    %906 = vmatpush1.bf16.msra.mxu0 0
    %907 = vmatprep.subr.bf16.mxu0 0
    %908 = vmatpush1.bf16.msra.mxu0 0
    %909 = vmatprep.subr.bf16.mxu0 0
    %910 = vmatpush1.bf16.msra.mxu0 0
    %911 = vmatprep.subr.bf16.mxu0 0
    %912 = vmatpush1.bf16.msra.mxu0 0
    %913 = vmatprep.subr.bf16.mxu0 0
    %914 = vmatpush1.bf16.msra.mxu0 0
    %915 = vmatprep.subr.bf16.mxu0 0
    %916 = vmatpush1.bf16.msra.mxu0 0
    %917 = vmatprep.mubr.bf16.mxu0 0
    %918 = vmatmul.mubr.bf16.gmra.mrb[0].mxu0 %v874
    %v919 = vpop.f32.mrb[0].mxu0
    %v920 = vadd.f32 %v858, %v919
    %v921 = vpop.f32.mrb[0].mxu0
    %v922 = vpop.f32.mrb[0].mxu0
    %v923 = vadd.f32 %v858, %v922
    %v924 = vpop.f32.mrb[0].mxu0
    %925 = vmatprep.mubr.bf16.mxu0 0
    %926 = vmatmul.mubr.bf16.gmra.mrb[0].mxu0 %v877
    %v927 = vpop.f32.mrb[0].mxu0
    %v928 = vadd.f32 %v858, %v927
    %v929 = vpop.f32.mrb[0].mxu0
    %v930 = vpop.f32.mrb[0].mxu0
    %v931 = vadd.f32 %v858, %v930
    %v932 = vpop.f32.mrb[0].mxu0
    %933 = vmatprep.mubr.bf16.mxu0 0
    %934 = vmatmul.mubr.bf16.gmra.mrb[0].mxu0 %v880
    %v935 = vpop.f32.mrb[0].mxu0
    %v936 = vadd.f32 %v858, %v935
    %v937 = vpop.f32.mrb[0].mxu0
    %v938 = vpop.f32.mrb[0].mxu0
    %v939 = vadd.f32 %v858, %v938
    %v940 = vpop.f32.mrb[0].mxu0
    %941 = vmatprep.mubr.bf16.mxu0 0
    %942 = vmatmul.mubr.bf16.gmra.mrb[0].mxu0 %v883
    %v943 = vpop.f32.mrb[0].mxu0
    %v944 = vadd.f32 %v858, %v943
    %v945 = vpop.f32.mrb[0].mxu0
    %v946 = vpop.f32.mrb[0].mxu0
    %v947 = vadd.f32 %v858, %v946
    %v948 = vpop.f32.mrb[0].mxu0
    %949 = vdwg.mxu0
    %950 = vst [vmem:[#allocation6] sm:$0xff] %v920
    %951 = vst [vmem:[#allocation6 + $0x8] sm:$0xff] %v923
    %952 = vst [vmem:[#allocation6 + $0x10] sm:$0xff] %v928
    %953 = vst [vmem:[#allocation6 + $0x18] sm:$0xff] %v931
    %954 = vst [vmem:[#allocation6 + $0x20] sm:$0xff] %v936
    %955 = vst [vmem:[#allocation6 + $0x28] sm:$0xff] %v939
    %956 = vst [vmem:[#allocation6 + $0x30] sm:$0xff] %v944
    %957 = vst [vmem:[#allocation6 + $0x38] sm:$0xff] %v947
    // Predicated region
    $region34: #{tpu_custom_call.1} parent=1 // pred_check
      _
    $region35: #{tpu_custom_call.1} parent=1 // pred_check_branch
      %959 = sbr.rel (0) target = $region37
    $region36: #{tpu_custom_call.1} parent=1 // pred_region
      %s961 = ssub.s32 1024, 1024
      %962 = vsyncadd [#allocation7], %s961
      %s963 = sshll.u32 [#allocation6], 4
      %s964 = int_to_ptr.vmem [resolvable:$true] %s963
      %969 = dma.vmem_to_hbm [thread:$0]  %s964, 1024, %s6, [#allocation7], 128, 128, 8
    $region37: #{tpu_custom_call.1} parent=1 // pred_fallthru
      _
    // Predicated region
    $region38: #{tpu_custom_call.1} parent=1 // pred_check
      _
    $region39: #{tpu_custom_call.1} parent=1 // pred_check_branch
      %971 = sbr.rel (0) target = $region41
    $region40: #{tpu_custom_call.1} parent=1 // pred_region
      %972 = dma.done [#allocation7], 1024
    $region41: #{tpu_custom_call.1} parent=1 // pred_fallthru
      _
    %973 = vsyncpa [#allocation7], 1

</llo_original>
